<compile_context>
chip_gen: v7x
topology: tpu7x:2x2x1
jax: 0.10.0
libtpu: 0.0.40
codegen_flags: <defaults>
</compile_context>

<pallas_src>
from functools import partial

import jax
import jax.numpy as jnp
from jax import lax
from jax.experimental import pallas as pl
from jax.experimental.pallas import tpu as pltpu

BN_EPS = 1e-5
LANE = 128


# ---------------------------------------------------------------------------
# Fused Pallas kernel (all layers + fused pooled readout, one grid step per chunk)
# ---------------------------------------------------------------------------
def _make_fused_kernel(n_layers, graphs_per_step, n_nodes, compute_dtype):
    L, BG, N = n_layers, graphs_per_step, n_nodes

    def kernel(eps_ref, a_ref, x_ref, *refs):
        # refs layout:
        #   per layer l: (w1, fb1, s1, w2, fb2, s2, w3, b3)   -> 8 * L refs
        #   then: w_out (full, lane-padded), b_out            -> 2 refs
        #   then: o_ref (output block, (BG, OUT_PAD))         -> 1 ref
        per_layer = [refs[8 * l: 8 * l + 8] for l in range(L)]
        w_out_ref = refs[8 * L]
        b_out_ref = refs[8 * L + 1]
        o_ref = refs[8 * L + 2]

        A = a_ref[...]                                           # (BG, N, N) compute dtype
        # diag(A) per graph, extracted ONCE per chunk (select + lane reduce).
        row = lax.broadcasted_iota(jnp.int32, (N, N), 0)
        col = lax.broadcasted_iota(jnp.int32, (N, N), 1)
        diag_mask = (row == col)[None]
        diag_A = jnp.sum(jnp.where(diag_mask, A.astype(jnp.float32), 0.0),
                         axis=2, keepdims=True)                  # (BG, N, 1) f32

        H = x_ref[...].astype(jnp.float32)                       # (BG, N, F_in) f32
        pooled_parts = [jnp.sum(H, axis=1)]                      # [(BG, f), ...]

        for l in range(L):
            w1, fb1, s1, w2, fb2, s2, w3, b3 = per_layer[l]
            eps = eps_ref[l]
            f = H.shape[-1]

            # A' @ H without materializing A':
            #   A @ H + (eps - 1) * diag(A) (.) H, row-scaled by s1 (folded BN1 scale).
            base = jnp.einsum("gij,gjf->gif", A, H.astype(compute_dtype),
                              preferred_element_type=jnp.float32)          # (BG, N, f)
            agg = s1[...] * (base + (eps - 1.0) * (diag_A * H))            # f32

            # MLP, batched over all BG*N rows (one matmul per weight).
            Hf = jnp.dot(agg.reshape(BG * N, f).astype(compute_dtype), w1[...],
                         preferred_element_type=jnp.float32)
            H = jnp.maximum(Hf.reshape(BG, N, -1) + fb1[...], 0.0)         # fb1 = s1*b1+t1

            Hf = jnp.dot(H.reshape(BG * N, -1).astype(compute_dtype), w2[...],
                         preferred_element_type=jnp.float32)
            H = jnp.maximum(s2[...] * Hf.reshape(BG, N, -1) + fb2[...], 0.0)  # fb2 = s2*b2+t2

            Hf = jnp.dot(H.reshape(BG * N, -1).astype(compute_dtype), w3[...],
                         preferred_element_type=jnp.float32)
            H = jnp.maximum(Hf.reshape(BG, N, -1) + b3[...], 0.0)

            pooled_parts.append(jnp.sum(H, axis=1))

        # Fused readout: ONE matmul over the lane-concat of all pooled features.
        pooled_cat = jnp.concatenate(pooled_parts, axis=-1)      # (BG, F_in + L*hidden)
        out = jnp.dot(pooled_cat.astype(compute_dtype), w_out_ref[...],
                      preferred_element_type=jnp.float32) + b_out_ref[...]
        o_ref[...] = out.astype(o_ref.dtype)                     # (BG, OUT_PAD) lane-dense

    return kernel


# ---------------------------------------------------------------------------
# Wrapper: generation-aware chunking, folded params, single pallas_call
# ---------------------------------------------------------------------------
@partial(jax.jit, static_argnames=("matmul_dtype",))
def gnn_forward(X, A, params, matmul_dtype=jnp.bfloat16):
    B, N, F_in = X.shape
    L = len(params["layers"])
    hidden = params["layers"][0]["w1"].shape[1]
    out_dim = params["w_out"].shape[1]
    OUT_PAD = pl.cdiv(out_dim, LANE) * LANE              # lane-dense output width
    F_TOT = F_in + L * hidden
    cdt = jnp.dtype(matmul_dtype)
    cb = cdt.itemsize

    # ---- generation-aware chunking + VMEM budgeting --------------------------------
    try:
        kind = jax.devices()[0].device_kind.lower()
    except Exception:
        kind = ""
    multi_tc = any(t in kind for t in ("v7", "v4", "v5p"))     # >1 TensorCore per chip
    try:
        vmem_cap = int(pltpu.get_tpu_info().vmem_capacity_bytes)
    except Exception:
        vmem_cap = 64 * 1024 * 1024                            # conservative (v7x) fallback
    budget = int(0.75 * vmem_cap)

    w_bytes = 0
    fl = F_in
    for _ in range(L):
        w_bytes += (fl * hidden + 2 * hidden * hidden) * cb          # w1, w2, w3
        w_bytes += (2 * N * hidden + 2 * N + hidden) * 4             # fb1, s1, fb2, s2, b3
        fl = hidden
    w_bytes += F_TOT * OUT_PAD * cb + OUT_PAD * 4                    # w_out, b_out

    def chunk_vmem(bg):
        io = (bg * N * N + bg * N * F_in) * cb + bg * OUT_PAD * 4    # A, X, out blocks
        interm = 4 * bg * N * max(F_in, hidden) * 4                  # H / agg / Hf temporaries
        return 2 * (w_bytes + io) + interm                           # 2x: double buffering

    num_chunks = 1
    if multi_tc and B % 2 == 0 and (B // 2) * N >= 256:
        num_chunks = 2                      # both TensorCores still get >=256 MLP rows
    divisors = [c for c in range(1, B + 1) if B % c == 0]
    chosen = None
    for c in divisors:                      # grow chunk count only if VMEM forces it
        if c >= num_chunks and chunk_vmem(B // c) <= budget:
            chosen = c
            break
    num_chunks = chosen if chosen is not None else B
    BG = B // num_chunks
    vmem_limit = int(min(0.9 * vmem_cap, max(32 * 1024 * 1024, 2 * chunk_vmem(BG))))

    # ---- folded / padded parameters -------------------------------------------------
    pad = OUT_PAD - out_dim
    w_out_p = jnp.pad(params["w_out"], ((0, 0), (0, pad))).astype(cdt)   # (F_TOT, OUT_PAD)
    b_out_p = jnp.pad(params["b_out"], ((0, 0), (0, pad)))               # (1, OUT_PAD) f32
    eps_all = jnp.concatenate([p["eps"].reshape(1) for p in params["layers"]])  # (L,)

    def shared_spec(shape):
        return pl.BlockSpec(shape, lambda c: (0,) * len(shape))

    operands = [eps_all, A.astype(cdt), X.astype(cdt)]
    in_specs = [
        pl.BlockSpec(memory_space=pltpu.MemorySpace.SMEM),          # eps (L,)
        pl.BlockSpec((BG, N, N), lambda c: (c, 0, 0)),              # A chunk
        pl.BlockSpec((BG, N, F_in), lambda c: (c, 0, 0)),           # X chunk
    ]
    for l, p in enumerate(params["layers"]):
        f_in_l = F_in if l == 0 else hidden
        fb1 = p["s1"] * p["b1"] + p["t1"]                           # (N, hidden) fused bias
        fb2 = p["s2"] * p["b2"] + p["t2"]                           # (N, hidden) fused bias
        operands.extend([p["w1"].astype(cdt), fb1, p["s1"],
                         p["w2"].astype(cdt), fb2, p["s2"],
                         p["w3"].astype(cdt), p["b3"]])
        in_specs.extend([
            shared_spec((f_in_l, hidden)),      # W1
            shared_spec((N, hidden)),           # fb1
            shared_spec((N, 1)),                # s1 (folded row scale)
            shared_spec((hidden, hidden)),      # W2
            shared_spec((N, hidden)),           # fb2
            shared_spec((N, 1)),                # s2
            shared_spec((hidden, hidden)),      # W3
            shared_spec((1, hidden)),           # b3
        ])
    operands.extend([w_out_p, b_out_p])
    in_specs.extend([shared_spec((F_TOT, OUT_PAD)), shared_spec((1, OUT_PAD))])

    # Advisory cost estimate for XLA scheduling of the single fused call.
    fl = F_in
    flops_per_graph = 2 * F_TOT * OUT_PAD
    for _ in range(L):
        flops_per_graph += 2 * N * N * fl + 2 * N * fl * hidden + 4 * N * hidden * hidden
        fl = hidden
    io_bytes = sum(int(o.size) * o.dtype.itemsize for o in operands[:3]) + B * OUT_PAD * 4
    weight_bytes_all = sum(int(o.size) * o.dtype.itemsize for o in operands[3:])
    cost = pl.CostEstimate(flops=B * flops_per_graph, transcendentals=0,
                           bytes_accessed=io_bytes + num_chunks * weight_bytes_all)

    kernel = _make_fused_kernel(L, BG, N, cdt)
    out_padded = pl.pallas_call(
        kernel,
        out_shape=jax.ShapeDtypeStruct((B, OUT_PAD), jnp.float32),
        grid=(num_chunks,),
        in_specs=in_specs,
        out_specs=pl.BlockSpec((BG, OUT_PAD), lambda c: (c, 0)),
        compiler_params=pltpu.CompilerParams(
            dimension_semantics=("parallel",),
            vmem_limit_bytes=vmem_limit),
        cost_estimate=cost,
    )(*operands)

    return out_padded[:, :out_dim]


# ---------------------------------------------------------------------------
# Pure-JAX reference (unfolded semantics, mirrors the PyTorch module exactly)
# ---------------------------------------------------------------------------
def _reference_forward(X, A, params):
    B, N, _ = A.shape
    eye = jnp.eye(N, dtype=X.dtype)
    hidden_states = [X]
    H = X
    for p in params["layers"]:
        A_mod = jnp.where(eye[None] > 0, p["eps"][0] * A, A)
        Hn = jnp.einsum("bij,bjf->bif", A_mod, H)
        Hn = Hn @ p["w1"] + p["b1"]
        Hn = Hn * p["s1"] + p["t1"]
        Hn = jnp.maximum(Hn, 0.0)
        Hn = Hn @ p["w2"] + p["b2"]
        Hn = Hn * p["s2"] + p["t2"]
        Hn = jnp.maximum(Hn, 0.0)
        Hn = Hn @ p["w3"] + p["b3"]
        Hn = jnp.maximum(Hn, 0.0)
        hidden_states.append(Hn)
        H = Hn
    Hc = jnp.concatenate(hidden_states, axis=2).sum(axis=1)
    return Hc @ params["w_out"] + params["b_out"]


# ---------------------------------------------------------------------------
# Deterministic parameter initialization (PyTorch-Linear-style uniform bounds)
# ---------------------------------------------------------------------------
def _linear_params(key, fan_in, fan_out):
    kw, kb = jax.random.split(key)
    bound = 1.0 / float(fan_in) ** 0.5
    w = jax.random.uniform(kw, (fan_in, fan_out), jnp.float32, -bound, bound)
    b = jax.random.uniform(kb, (1, fan_out), jnp.float32, -bound, bound)
    return w, b


def _bn_params(key, n):
    kg, kb = jax.random.split(key)
    gamma = 1.0 + 0.1 * jax.random.normal(kg, (n,), jnp.float32)
    beta = 0.1 * jax.random.normal(kb, (n,), jnp.float32)
    running_mean = jnp.zeros((n,), jnp.float32)
    running_var = jnp.ones((n,), jnp.float32)
    scale = gamma / jnp.sqrt(running_var + BN_EPS)
    shift = beta - running_mean * scale
    return scale.reshape(n, 1), shift.reshape(n, 1)


def init_gnn_params(key, input_dim, hidden_dim, output_dim, n_layers, batchnorm_dim):
    layers = []
    in_dim = input_dim
    for _ in range(n_layers):
        key, k1, k2, k3, k4, k5, k6 = jax.random.split(key, 7)
        w1, b1 = _linear_params(k1, in_dim, hidden_dim)
        s1, t1 = _bn_params(k2, batchnorm_dim)
        w2, b2 = _linear_params(k3, hidden_dim, hidden_dim)
        s2, t2 = _bn_params(k4, batchnorm_dim)
        w3, b3 = _linear_params(k5, hidden_dim, hidden_dim)
        eps = jax.random.uniform(k6, (1,), jnp.float32, 0.0, 1.0)
        layers.append(dict(eps=eps, w1=w1, b1=b1, s1=s1, t1=t1,
                           w2=w2, b2=b2, s2=s2, t2=t2, w3=w3, b3=b3))
        in_dim = hidden_dim
    key, ko = jax.random.split(key)
    w_out, b_out = _linear_params(ko, input_dim + hidden_dim * n_layers, output_dim)
    return dict(layers=layers, w_out=w_out, b_out=b_out)


# ---------------------------------------------------------------------------
if __name__ == "__main__":
    B, N = 2, 8                      # batch of graphs, nodes per graph
    input_dim, hidden_dim, output_dim = 16, 32, 4
    n_layers = 3
    batchnorm_dim = N                # BatchNorm1d channel dim == node dim

    key = jax.random.PRNGKey(0)
    kx, ka, kp = jax.random.split(key, 3)

    X = jax.random.normal(kx, (B, N, input_dim), jnp.float32)
    A_raw = jax.random.uniform(ka, (B, N, N), jnp.float32)
    A = 0.5 * (A_raw + jnp.swapaxes(A_raw, 1, 2))            # symmetric weighted adjacency

    params = init_gnn_params(kp, input_dim, hidden_dim, output_dim,
                             n_layers, batchnorm_dim)

    with jax.default_matmul_precision("highest"):
        ref = _reference_forward(X, A, params)

    # f32 matmul path: exact-parity correctness check.
    out_f32 = jax.block_until_ready(gnn_forward(X, A, params, matmul_dtype=jnp.float32))
    assert out_f32.shape == (B, output_dim), out_f32.shape
    assert bool(jnp.all(jnp.isfinite(out_f32)))
    assert bool(jnp.allclose(out_f32, ref, rtol=1e-2, atol=1e-2)), (out_f32, ref)

    # Default path: bf16 MXU operands, f32 accumulation / elementwise math.
    out = jax.block_until_ready(gnn_forward(X, A, params))
    assert out.shape == (B, output_dim), out.shape
    assert bool(jnp.all(jnp.isfinite(out)))
    assert bool(jnp.allclose(out, ref, rtol=5e-2, atol=5e-2)), (out, ref)

    print("KERNEL_OK")
</pallas_src>

<mosaic_0001>
module attributes {stable_mosaic.version = 11 : i64} {
  func.func @kernel(%arg0: i32, %arg1: memref<3xf32, #tpu.memory_space<smem>>, %arg2: memref<2x8x8xf32, #tpu.memory_space<vmem>>, %arg3: memref<2x8x16xf32, #tpu.memory_space<vmem>>, %arg4: memref<16x32xf32, #tpu.memory_space<vmem>>, %arg5: memref<8x32xf32, #tpu.memory_space<vmem>>, %arg6: memref<8x1xf32, #tpu.memory_space<vmem>>, %arg7: memref<32x32xf32, #tpu.memory_space<vmem>>, %arg8: memref<8x32xf32, #tpu.memory_space<vmem>>, %arg9: memref<8x1xf32, #tpu.memory_space<vmem>>, %arg10: memref<32x32xf32, #tpu.memory_space<vmem>>, %arg11: memref<1x32xf32, #tpu.memory_space<vmem>>, %arg12: memref<32x32xf32, #tpu.memory_space<vmem>>, %arg13: memref<8x32xf32, #tpu.memory_space<vmem>>, %arg14: memref<8x1xf32, #tpu.memory_space<vmem>>, %arg15: memref<32x32xf32, #tpu.memory_space<vmem>>, %arg16: memref<8x32xf32, #tpu.memory_space<vmem>>, %arg17: memref<8x1xf32, #tpu.memory_space<vmem>>, %arg18: memref<32x32xf32, #tpu.memory_space<vmem>>, %arg19: memref<1x32xf32, #tpu.memory_space<vmem>>, %arg20: memref<32x32xf32, #tpu.memory_space<vmem>>, %arg21: memref<8x32xf32, #tpu.memory_space<vmem>>, %arg22: memref<8x1xf32, #tpu.memory_space<vmem>>, %arg23: memref<32x32xf32, #tpu.memory_space<vmem>>, %arg24: memref<8x32xf32, #tpu.memory_space<vmem>>, %arg25: memref<8x1xf32, #tpu.memory_space<vmem>>, %arg26: memref<32x32xf32, #tpu.memory_space<vmem>>, %arg27: memref<1x32xf32, #tpu.memory_space<vmem>>, %arg28: memref<112x128xf32, #tpu.memory_space<vmem>>, %arg29: memref<1x128xf32, #tpu.memory_space<vmem>>, %arg30: memref<2x128xf32, #tpu.memory_space<vmem>>) attributes {dimension_semantics = [#tpu.dimension_semantics<parallel>], iteration_bounds = array<i64: 1>, scalar_prefetch = 0 : i64, scratch_operands = 0 : i64, tpu.core_type = #tpu.core_type<tc>, window_params = [{transform_indices = @transform_0, window_bounds = array<i64: 3>}, {transform_indices = @transform_1, window_bounds = array<i64: 2, 8, 8>}, {transform_indices = @transform_2, window_bounds = array<i64: 2, 8, 16>}, {pipeline_mode = #tpu.pipeline_mode<synchronous>, transform_indices = @transform_3, window_bounds = array<i64: 16, 32>}, {pipeline_mode = #tpu.pipeline_mode<synchronous>, transform_indices = @transform_4, window_bounds = array<i64: 8, 32>}, {pipeline_mode = #tpu.pipeline_mode<synchronous>, transform_indices = @transform_5, window_bounds = array<i64: 8, 1>}, {pipeline_mode = #tpu.pipeline_mode<synchronous>, transform_indices = @transform_6, window_bounds = array<i64: 32, 32>}, {pipeline_mode = #tpu.pipeline_mode<synchronous>, transform_indices = @transform_7, window_bounds = array<i64: 8, 32>}, {pipeline_mode = #tpu.pipeline_mode<synchronous>, transform_indices = @transform_8, window_bounds = array<i64: 8, 1>}, {pipeline_mode = #tpu.pipeline_mode<synchronous>, transform_indices = @transform_9, window_bounds = array<i64: 32, 32>}, {pipeline_mode = #tpu.pipeline_mode<synchronous>, transform_indices = @transform_10, window_bounds = array<i64: 1, 32>}, {pipeline_mode = #tpu.pipeline_mode<synchronous>, transform_indices = @transform_11, window_bounds = array<i64: 32, 32>}, {pipeline_mode = #tpu.pipeline_mode<synchronous>, transform_indices = @transform_12, window_bounds = array<i64: 8, 32>}, {pipeline_mode = #tpu.pipeline_mode<synchronous>, transform_indices = @transform_13, window_bounds = array<i64: 8, 1>}, {pipeline_mode = #tpu.pipeline_mode<synchronous>, transform_indices = @transform_14, window_bounds = array<i64: 32, 32>}, {pipeline_mode = #tpu.pipeline_mode<synchronous>, transform_indices = @transform_15, window_bounds = array<i64: 8, 32>}, {pipeline_mode = #tpu.pipeline_mode<synchronous>, transform_indices = @transform_16, window_bounds = array<i64: 8, 1>}, {pipeline_mode = #tpu.pipeline_mode<synchronous>, transform_indices = @transform_17, window_bounds = array<i64: 32, 32>}, {pipeline_mode = #tpu.pipeline_mode<synchronous>, transform_indices = @transform_18, window_bounds = array<i64: 1, 32>}, {pipeline_mode = #tpu.pipeline_mode<synchronous>, transform_indices = @transform_19, window_bounds = array<i64: 32, 32>}, {pipeline_mode = #tpu.pipeline_mode<synchronous>, transform_indices = @transform_20, window_bounds = array<i64: 8, 32>}, {pipeline_mode = #tpu.pipeline_mode<synchronous>, transform_indices = @transform_21, window_bounds = array<i64: 8, 1>}, {pipeline_mode = #tpu.pipeline_mode<synchronous>, transform_indices = @transform_22, window_bounds = array<i64: 32, 32>}, {pipeline_mode = #tpu.pipeline_mode<synchronous>, transform_indices = @transform_23, window_bounds = array<i64: 8, 32>}, {pipeline_mode = #tpu.pipeline_mode<synchronous>, transform_indices = @transform_24, window_bounds = array<i64: 8, 1>}, {pipeline_mode = #tpu.pipeline_mode<synchronous>, transform_indices = @transform_25, window_bounds = array<i64: 32, 32>}, {pipeline_mode = #tpu.pipeline_mode<synchronous>, transform_indices = @transform_26, window_bounds = array<i64: 1, 32>}, {pipeline_mode = #tpu.pipeline_mode<synchronous>, transform_indices = @transform_27, window_bounds = array<i64: 112, 128>}, {pipeline_mode = #tpu.pipeline_mode<synchronous>, transform_indices = @transform_28, window_bounds = array<i64: 1, 128>}, {transform_indices = @transform_29, window_bounds = array<i64: 2, 128>}]} {
    %c0 = arith.constant 0 : index
    %c0_0 = arith.constant 0 : index
    %c0_1 = arith.constant 0 : index
    %0 = vector.load %arg2[%c0, %c0_0, %c0_1] : memref<2x8x8xf32, #tpu.memory_space<vmem>>, vector<2x8x8xf32>
    %1 = tpu.iota {dimensions = array<i32: 0>} : vector<8x8xi32>
    %2 = tpu.iota {dimensions = array<i32: 1>} : vector<8x8xi32>
    %3 = arith.cmpi eq, %1, %2 : vector<8x8xi32>
    %4 = vector.shape_cast %3 : vector<8x8xi1> to vector<1x8x8xi1>
    %cst = arith.constant 0.000000e+00 : f32
    %5 = vector.shape_cast %4 : vector<1x8x8xi1> to vector<1x8x8xi1>
    %6 = vector.broadcast %5 : vector<1x8x8xi1> to vector<2x8x8xi1>
    %7 = vector.broadcast %cst : f32 to vector<2x8x8xf32>
    %8 = arith.select %6, %0, %7 : vector<2x8x8xi1>, vector<2x8x8xf32>
    %cst_2 = arith.constant dense<0.000000e+00> : vector<2x8xf32>
    %9 = vector.multi_reduction <add>, %8, %cst_2 [2] : vector<2x8x8xf32> to vector<2x8xf32>
    %10 = vector.shape_cast %9 : vector<2x8xf32> to vector<2x8x1xf32>
    %c0_3 = arith.constant 0 : index
    %c0_4 = arith.constant 0 : index
    %c0_5 = arith.constant 0 : index
    %11 = vector.load %arg3[%c0_3, %c0_4, %c0_5] : memref<2x8x16xf32, #tpu.memory_space<vmem>>, vector<2x8x16xf32>
    %cst_6 = arith.constant dense<0.000000e+00> : vector<2x16xf32>
    %12 = vector.multi_reduction <add>, %11, %cst_6 [1] : vector<2x8x16xf32> to vector<2x16xf32>
    %c0_7 = arith.constant 0 : index
    %13 = memref.load %arg1[%c0_7] : memref<3xf32, #tpu.memory_space<smem>>
    "tpu.trace_start"() <{level = 10 : i32, message = "gij,gjf->gif"}> : () -> ()
    %cst_8 = arith.constant dense<0.000000e+00> : vector<2x8x16xf32>
    %14 = tpu.matmul %0, %11, %cst_8 {dimension_numbers = #tpu.dot_dimension_numbers<[2], [1], [1], [2], [0, 0, 0, 1, 1, 2], [0], [0]>} : vector<2x8x8xf32>, vector<2x8x16xf32>, vector<2x8x16xf32> -> vector<2x8x16xf32>
    "tpu.trace_stop"() : () -> ()
    %c0_9 = arith.constant 0 : index
    %c0_10 = arith.constant 0 : index
    %15 = vector.load %arg6[%c0_9, %c0_10] : memref<8x1xf32, #tpu.memory_space<vmem>>, vector<8x1xf32>
    %cst_11 = arith.constant 1.000000e+00 : f32
    %16 = arith.subf %13, %cst_11 : f32
    %17 = vector.broadcast %10 : vector<2x8x1xf32> to vector<2x8x16xf32>
    %18 = arith.mulf %17, %11 : vector<2x8x16xf32>
    %19 = vector.broadcast %16 : f32 to vector<2x8x16xf32>
    %20 = arith.mulf %19, %18 : vector<2x8x16xf32>
    %21 = arith.addf %14, %20 : vector<2x8x16xf32>
    %22 = vector.shape_cast %15 : vector<8x1xf32> to vector<1x8x1xf32>
    %23 = vector.broadcast %22 : vector<1x8x1xf32> to vector<2x8x16xf32>
    %24 = arith.mulf %23, %21 : vector<2x8x16xf32>
    %25 = vector.shape_cast %24 : vector<2x8x16xf32> to vector<16x16xf32>
    %c0_12 = arith.constant 0 : index
    %c0_13 = arith.constant 0 : index
    %26 = vector.load %arg4[%c0_12, %c0_13] : memref<16x32xf32, #tpu.memory_space<vmem>>, vector<16x32xf32>
    %cst_14 = arith.constant dense<0.000000e+00> : vector<16x32xf32>
    %27 = tpu.matmul %25, %26, %cst_14 {dimension_numbers = #tpu.dot_dimension_numbers<[1], [0], [0], [1], [0, 0, 1, 1], [], []>} : vector<16x16xf32>, vector<16x32xf32>, vector<16x32xf32> -> vector<16x32xf32>
    %28 = vector.shape_cast %27 : vector<16x32xf32> to vector<2x8x32xf32>
    %c0_15 = arith.constant 0 : index
    %c0_16 = arith.constant 0 : index
    %29 = vector.load %arg5[%c0_15, %c0_16] : memref<8x32xf32, #tpu.memory_space<vmem>>, vector<8x32xf32>
    %30 = vector.shape_cast %29 : vector<8x32xf32> to vector<1x8x32xf32>
    %31 = vector.broadcast %30 : vector<1x8x32xf32> to vector<2x8x32xf32>
    %32 = arith.addf %28, %31 : vector<2x8x32xf32>
    %cst_17 = arith.constant 0.000000e+00 : f32
    %33 = vector.broadcast %cst_17 : f32 to vector<2x8x32xf32>
    %34 = arith.maximumf %32, %33 : vector<2x8x32xf32>
    %35 = vector.shape_cast %34 : vector<2x8x32xf32> to vector<16x32xf32>
    %c0_18 = arith.constant 0 : index
    %c0_19 = arith.constant 0 : index
    %36 = vector.load %arg7[%c0_18, %c0_19] : memref<32x32xf32, #tpu.memory_space<vmem>>, vector<32x32xf32>
    %cst_20 = arith.constant dense<0.000000e+00> : vector<16x32xf32>
    %37 = tpu.matmul %35, %36, %cst_20 {dimension_numbers = #tpu.dot_dimension_numbers<[1], [0], [0], [1], [0, 0, 1, 1], [], []>} : vector<16x32xf32>, vector<32x32xf32>, vector<16x32xf32> -> vector<16x32xf32>
    %c0_21 = arith.constant 0 : index
    %c0_22 = arith.constant 0 : index
    %38 = vector.load %arg9[%c0_21, %c0_22] : memref<8x1xf32, #tpu.memory_space<vmem>>, vector<8x1xf32>
    %39 = vector.shape_cast %37 : vector<16x32xf32> to vector<2x8x32xf32>
    %40 = vector.shape_cast %38 : vector<8x1xf32> to vector<1x8x1xf32>
    %41 = vector.broadcast %40 : vector<1x8x1xf32> to vector<2x8x32xf32>
    %42 = arith.mulf %41, %39 : vector<2x8x32xf32>
    %c0_23 = arith.constant 0 : index
    %c0_24 = arith.constant 0 : index
    %43 = vector.load %arg8[%c0_23, %c0_24] : memref<8x32xf32, #tpu.memory_space<vmem>>, vector<8x32xf32>
    %44 = vector.shape_cast %43 : vector<8x32xf32> to vector<1x8x32xf32>
    %45 = vector.broadcast %44 : vector<1x8x32xf32> to vector<2x8x32xf32>
    %46 = arith.addf %42, %45 : vector<2x8x32xf32>
    %cst_25 = arith.constant 0.000000e+00 : f32
    %47 = vector.broadcast %cst_25 : f32 to vector<2x8x32xf32>
    %48 = arith.maximumf %46, %47 : vector<2x8x32xf32>
    %49 = vector.shape_cast %48 : vector<2x8x32xf32> to vector<16x32xf32>
    %c0_26 = arith.constant 0 : index
    %c0_27 = arith.constant 0 : index
    %50 = vector.load %arg10[%c0_26, %c0_27] : memref<32x32xf32, #tpu.memory_space<vmem>>, vector<32x32xf32>
    %cst_28 = arith.constant dense<0.000000e+00> : vector<16x32xf32>
    %51 = tpu.matmul %49, %50, %cst_28 {dimension_numbers = #tpu.dot_dimension_numbers<[1], [0], [0], [1], [0, 0, 1, 1], [], []>} : vector<16x32xf32>, vector<32x32xf32>, vector<16x32xf32> -> vector<16x32xf32>
    %52 = vector.shape_cast %51 : vector<16x32xf32> to vector<2x8x32xf32>
    %c0_29 = arith.constant 0 : index
    %c0_30 = arith.constant 0 : index
    %53 = vector.load %arg11[%c0_29, %c0_30] : memref<1x32xf32, #tpu.memory_space<vmem>>, vector<1x32xf32>
    %54 = vector.shape_cast %53 : vector<1x32xf32> to vector<1x1x32xf32>
    %55 = vector.broadcast %54 : vector<1x1x32xf32> to vector<2x8x32xf32>
    %56 = arith.addf %52, %55 : vector<2x8x32xf32>
    %cst_31 = arith.constant 0.000000e+00 : f32
    %57 = vector.broadcast %cst_31 : f32 to vector<2x8x32xf32>
    %58 = arith.maximumf %56, %57 : vector<2x8x32xf32>
    %cst_32 = arith.constant dense<0.000000e+00> : vector<2x32xf32>
    %59 = vector.multi_reduction <add>, %58, %cst_32 [1] : vector<2x8x32xf32> to vector<2x32xf32>
    %c1 = arith.constant 1 : index
    %60 = memref.load %arg1[%c1] : memref<3xf32, #tpu.memory_space<smem>>
    "tpu.trace_start"() <{level = 10 : i32, message = "gij,gjf->gif"}> : () -> ()
    %cst_33 = arith.constant dense<0.000000e+00> : vector<2x8x32xf32>
    %61 = tpu.matmul %0, %58, %cst_33 {dimension_numbers = #tpu.dot_dimension_numbers<[2], [1], [1], [2], [0, 0, 0, 1, 1, 2], [0], [0]>} : vector<2x8x8xf32>, vector<2x8x32xf32>, vector<2x8x32xf32> -> vector<2x8x32xf32>
    "tpu.trace_stop"() : () -> ()
    %c0_34 = arith.constant 0 : index
    %c0_35 = arith.constant 0 : index
    %62 = vector.load %arg14[%c0_34, %c0_35] : memref<8x1xf32, #tpu.memory_space<vmem>>, vector<8x1xf32>
    %cst_36 = arith.constant 1.000000e+00 : f32
    %63 = arith.subf %60, %cst_36 : f32
    %64 = vector.broadcast %10 : vector<2x8x1xf32> to vector<2x8x32xf32>
    %65 = arith.mulf %64, %58 : vector<2x8x32xf32>
    %66 = vector.broadcast %63 : f32 to vector<2x8x32xf32>
    %67 = arith.mulf %66, %65 : vector<2x8x32xf32>
    %68 = arith.addf %61, %67 : vector<2x8x32xf32>
    %69 = vector.shape_cast %62 : vector<8x1xf32> to vector<1x8x1xf32>
    %70 = vector.broadcast %69 : vector<1x8x1xf32> to vector<2x8x32xf32>
    %71 = arith.mulf %70, %68 : vector<2x8x32xf32>
    %72 = vector.shape_cast %71 : vector<2x8x32xf32> to vector<16x32xf32>
    %c0_37 = arith.constant 0 : index
    %c0_38 = arith.constant 0 : index
    %73 = vector.load %arg12[%c0_37, %c0_38] : memref<32x32xf32, #tpu.memory_space<vmem>>, vector<32x32xf32>
    %cst_39 = arith.constant dense<0.000000e+00> : vector<16x32xf32>
    %74 = tpu.matmul %72, %73, %cst_39 {dimension_numbers = #tpu.dot_dimension_numbers<[1], [0], [0], [1], [0, 0, 1, 1], [], []>} : vector<16x32xf32>, vector<32x32xf32>, vector<16x32xf32> -> vector<16x32xf32>
    %75 = vector.shape_cast %74 : vector<16x32xf32> to vector<2x8x32xf32>
    %c0_40 = arith.constant 0 : index
    %c0_41 = arith.constant 0 : index
    %76 = vector.load %arg13[%c0_40, %c0_41] : memref<8x32xf32, #tpu.memory_space<vmem>>, vector<8x32xf32>
    %77 = vector.shape_cast %76 : vector<8x32xf32> to vector<1x8x32xf32>
    %78 = vector.broadcast %77 : vector<1x8x32xf32> to vector<2x8x32xf32>
    %79 = arith.addf %75, %78 : vector<2x8x32xf32>
    %cst_42 = arith.constant 0.000000e+00 : f32
    %80 = vector.broadcast %cst_42 : f32 to vector<2x8x32xf32>
    %81 = arith.maximumf %79, %80 : vector<2x8x32xf32>
    %82 = vector.shape_cast %81 : vector<2x8x32xf32> to vector<16x32xf32>
    %c0_43 = arith.constant 0 : index
    %c0_44 = arith.constant 0 : index
    %83 = vector.load %arg15[%c0_43, %c0_44] : memref<32x32xf32, #tpu.memory_space<vmem>>, vector<32x32xf32>
    %cst_45 = arith.constant dense<0.000000e+00> : vector<16x32xf32>
    %84 = tpu.matmul %82, %83, %cst_45 {dimension_numbers = #tpu.dot_dimension_numbers<[1], [0], [0], [1], [0, 0, 1, 1], [], []>} : vector<16x32xf32>, vector<32x32xf32>, vector<16x32xf32> -> vector<16x32xf32>
    %c0_46 = arith.constant 0 : index
    %c0_47 = arith.constant 0 : index
    %85 = vector.load %arg17[%c0_46, %c0_47] : memref<8x1xf32, #tpu.memory_space<vmem>>, vector<8x1xf32>
    %86 = vector.shape_cast %84 : vector<16x32xf32> to vector<2x8x32xf32>
    %87 = vector.shape_cast %85 : vector<8x1xf32> to vector<1x8x1xf32>
    %88 = vector.broadcast %87 : vector<1x8x1xf32> to vector<2x8x32xf32>
    %89 = arith.mulf %88, %86 : vector<2x8x32xf32>
    %c0_48 = arith.constant 0 : index
    %c0_49 = arith.constant 0 : index
    %90 = vector.load %arg16[%c0_48, %c0_49] : memref<8x32xf32, #tpu.memory_space<vmem>>, vector<8x32xf32>
    %91 = vector.shape_cast %90 : vector<8x32xf32> to vector<1x8x32xf32>
    %92 = vector.broadcast %91 : vector<1x8x32xf32> to vector<2x8x32xf32>
    %93 = arith.addf %89, %92 : vector<2x8x32xf32>
    %cst_50 = arith.constant 0.000000e+00 : f32
    %94 = vector.broadcast %cst_50 : f32 to vector<2x8x32xf32>
    %95 = arith.maximumf %93, %94 : vector<2x8x32xf32>
    %96 = vector.shape_cast %95 : vector<2x8x32xf32> to vector<16x32xf32>
    %c0_51 = arith.constant 0 : index
    %c0_52 = arith.constant 0 : index
    %97 = vector.load %arg18[%c0_51, %c0_52] : memref<32x32xf32, #tpu.memory_space<vmem>>, vector<32x32xf32>
    %cst_53 = arith.constant dense<0.000000e+00> : vector<16x32xf32>
    %98 = tpu.matmul %96, %97, %cst_53 {dimension_numbers = #tpu.dot_dimension_numbers<[1], [0], [0], [1], [0, 0, 1, 1], [], []>} : vector<16x32xf32>, vector<32x32xf32>, vector<16x32xf32> -> vector<16x32xf32>
    %99 = vector.shape_cast %98 : vector<16x32xf32> to vector<2x8x32xf32>
    %c0_54 = arith.constant 0 : index
    %c0_55 = arith.constant 0 : index
    %100 = vector.load %arg19[%c0_54, %c0_55] : memref<1x32xf32, #tpu.memory_space<vmem>>, vector<1x32xf32>
    %101 = vector.shape_cast %100 : vector<1x32xf32> to vector<1x1x32xf32>
    %102 = vector.broadcast %101 : vector<1x1x32xf32> to vector<2x8x32xf32>
    %103 = arith.addf %99, %102 : vector<2x8x32xf32>
    %cst_56 = arith.constant 0.000000e+00 : f32
    %104 = vector.broadcast %cst_56 : f32 to vector<2x8x32xf32>
    %105 = arith.maximumf %103, %104 : vector<2x8x32xf32>
    %cst_57 = arith.constant dense<0.000000e+00> : vector<2x32xf32>
    %106 = vector.multi_reduction <add>, %105, %cst_57 [1] : vector<2x8x32xf32> to vector<2x32xf32>
    %c2 = arith.constant 2 : index
    %107 = memref.load %arg1[%c2] : memref<3xf32, #tpu.memory_space<smem>>
    "tpu.trace_start"() <{level = 10 : i32, message = "gij,gjf->gif"}> : () -> ()
    %cst_58 = arith.constant dense<0.000000e+00> : vector<2x8x32xf32>
    %108 = tpu.matmul %0, %105, %cst_58 {dimension_numbers = #tpu.dot_dimension_numbers<[2], [1], [1], [2], [0, 0, 0, 1, 1, 2], [0], [0]>} : vector<2x8x8xf32>, vector<2x8x32xf32>, vector<2x8x32xf32> -> vector<2x8x32xf32>
    "tpu.trace_stop"() : () -> ()
    %c0_59 = arith.constant 0 : index
    %c0_60 = arith.constant 0 : index
    %109 = vector.load %arg22[%c0_59, %c0_60] : memref<8x1xf32, #tpu.memory_space<vmem>>, vector<8x1xf32>
    %cst_61 = arith.constant 1.000000e+00 : f32
    %110 = arith.subf %107, %cst_61 : f32
    %111 = vector.broadcast %10 : vector<2x8x1xf32> to vector<2x8x32xf32>
    %112 = arith.mulf %111, %105 : vector<2x8x32xf32>
    %113 = vector.broadcast %110 : f32 to vector<2x8x32xf32>
    %114 = arith.mulf %113, %112 : vector<2x8x32xf32>
    %115 = arith.addf %108, %114 : vector<2x8x32xf32>
    %116 = vector.shape_cast %109 : vector<8x1xf32> to vector<1x8x1xf32>
    %117 = vector.broadcast %116 : vector<1x8x1xf32> to vector<2x8x32xf32>
    %118 = arith.mulf %117, %115 : vector<2x8x32xf32>
    %119 = vector.shape_cast %118 : vector<2x8x32xf32> to vector<16x32xf32>
    %c0_62 = arith.constant 0 : index
    %c0_63 = arith.constant 0 : index
    %120 = vector.load %arg20[%c0_62, %c0_63] : memref<32x32xf32, #tpu.memory_space<vmem>>, vector<32x32xf32>
    %cst_64 = arith.constant dense<0.000000e+00> : vector<16x32xf32>
    %121 = tpu.matmul %119, %120, %cst_64 {dimension_numbers = #tpu.dot_dimension_numbers<[1], [0], [0], [1], [0, 0, 1, 1], [], []>} : vector<16x32xf32>, vector<32x32xf32>, vector<16x32xf32> -> vector<16x32xf32>
    %122 = vector.shape_cast %121 : vector<16x32xf32> to vector<2x8x32xf32>
    %c0_65 = arith.constant 0 : index
    %c0_66 = arith.constant 0 : index
    %123 = vector.load %arg21[%c0_65, %c0_66] : memref<8x32xf32, #tpu.memory_space<vmem>>, vector<8x32xf32>
    %124 = vector.shape_cast %123 : vector<8x32xf32> to vector<1x8x32xf32>
    %125 = vector.broadcast %124 : vector<1x8x32xf32> to vector<2x8x32xf32>
    %126 = arith.addf %122, %125 : vector<2x8x32xf32>
    %cst_67 = arith.constant 0.000000e+00 : f32
    %127 = vector.broadcast %cst_67 : f32 to vector<2x8x32xf32>
    %128 = arith.maximumf %126, %127 : vector<2x8x32xf32>
    %129 = vector.shape_cast %128 : vector<2x8x32xf32> to vector<16x32xf32>
    %c0_68 = arith.constant 0 : index
    %c0_69 = arith.constant 0 : index
    %130 = vector.load %arg23[%c0_68, %c0_69] : memref<32x32xf32, #tpu.memory_space<vmem>>, vector<32x32xf32>
    %cst_70 = arith.constant dense<0.000000e+00> : vector<16x32xf32>
    %131 = tpu.matmul %129, %130, %cst_70 {dimension_numbers = #tpu.dot_dimension_numbers<[1], [0], [0], [1], [0, 0, 1, 1], [], []>} : vector<16x32xf32>, vector<32x32xf32>, vector<16x32xf32> -> vector<16x32xf32>
    %c0_71 = arith.constant 0 : index
    %c0_72 = arith.constant 0 : index
    %132 = vector.load %arg25[%c0_71, %c0_72] : memref<8x1xf32, #tpu.memory_space<vmem>>, vector<8x1xf32>
    %133 = vector.shape_cast %131 : vector<16x32xf32> to vector<2x8x32xf32>
    %134 = vector.shape_cast %132 : vector<8x1xf32> to vector<1x8x1xf32>
    %135 = vector.broadcast %134 : vector<1x8x1xf32> to vector<2x8x32xf32>
    %136 = arith.mulf %135, %133 : vector<2x8x32xf32>
    %c0_73 = arith.constant 0 : index
    %c0_74 = arith.constant 0 : index
    %137 = vector.load %arg24[%c0_73, %c0_74] : memref<8x32xf32, #tpu.memory_space<vmem>>, vector<8x32xf32>
    %138 = vector.shape_cast %137 : vector<8x32xf32> to vector<1x8x32xf32>
    %139 = vector.broadcast %138 : vector<1x8x32xf32> to vector<2x8x32xf32>
    %140 = arith.addf %136, %139 : vector<2x8x32xf32>
    %cst_75 = arith.constant 0.000000e+00 : f32
    %141 = vector.broadcast %cst_75 : f32 to vector<2x8x32xf32>
    %142 = arith.maximumf %140, %141 : vector<2x8x32xf32>
    %143 = vector.shape_cast %142 : vector<2x8x32xf32> to vector<16x32xf32>
    %c0_76 = arith.constant 0 : index
    %c0_77 = arith.constant 0 : index
    %144 = vector.load %arg26[%c0_76, %c0_77] : memref<32x32xf32, #tpu.memory_space<vmem>>, vector<32x32xf32>
    %cst_78 = arith.constant dense<0.000000e+00> : vector<16x32xf32>
    %145 = tpu.matmul %143, %144, %cst_78 {dimension_numbers = #tpu.dot_dimension_numbers<[1], [0], [0], [1], [0, 0, 1, 1], [], []>} : vector<16x32xf32>, vector<32x32xf32>, vector<16x32xf32> -> vector<16x32xf32>
    %146 = vector.shape_cast %145 : vector<16x32xf32> to vector<2x8x32xf32>
    %c0_79 = arith.constant 0 : index
    %c0_80 = arith.constant 0 : index
    %147 = vector.load %arg27[%c0_79, %c0_80] : memref<1x32xf32, #tpu.memory_space<vmem>>, vector<1x32xf32>
    %148 = vector.shape_cast %147 : vector<1x32xf32> to vector<1x1x32xf32>
    %149 = vector.broadcast %148 : vector<1x1x32xf32> to vector<2x8x32xf32>
    %150 = arith.addf %146, %149 : vector<2x8x32xf32>
    %cst_81 = arith.constant 0.000000e+00 : f32
    %151 = vector.broadcast %cst_81 : f32 to vector<2x8x32xf32>
    %152 = arith.maximumf %150, %151 : vector<2x8x32xf32>
    %cst_82 = arith.constant dense<0.000000e+00> : vector<2x32xf32>
    %153 = vector.multi_reduction <add>, %152, %cst_82 [1] : vector<2x8x32xf32> to vector<2x32xf32>
    %154 = tpu.concatenate %12, %59, %106, %153 in 1 : vector<2x16xf32>, vector<2x32xf32>, vector<2x32xf32>, vector<2x32xf32> -> vector<2x112xf32>
    %c0_83 = arith.constant 0 : index
    %c0_84 = arith.constant 0 : index
    %155 = vector.load %arg28[%c0_83, %c0_84] : memref<112x128xf32, #tpu.memory_space<vmem>>, vector<112x128xf32>
    %cst_85 = arith.constant dense<0.000000e+00> : vector<2x128xf32>
    %156 = tpu.matmul %154, %155, %cst_85 {dimension_numbers = #tpu.dot_dimension_numbers<[1], [0], [0], [1], [0, 0, 1, 1], [], []>} : vector<2x112xf32>, vector<112x128xf32>, vector<2x128xf32> -> vector<2x128xf32>
    %c0_86 = arith.constant 0 : index
    %c0_87 = arith.constant 0 : index
    %157 = vector.load %arg29[%c0_86, %c0_87] : memref<1x128xf32, #tpu.memory_space<vmem>>, vector<1x128xf32>
    %158 = vector.broadcast %157 : vector<1x128xf32> to vector<2x128xf32>
    %159 = arith.addf %156, %158 : vector<2x128xf32>
    %c0_88 = arith.constant 0 : index
    %c0_89 = arith.constant 0 : index
    %160 = vector.load %arg30[%c0_88, %c0_89] : memref<2x128xf32, #tpu.memory_space<vmem>>, vector<2x128xf32>
    tpu.vector_store %arg30[%c0_88, %c0_89], %159 {strides = array<i32>} : memref<2x128xf32, #tpu.memory_space<vmem>>, vector<2x128xf32>,
    return
  }
  func.func @transform_0(%arg0: i32) -> i32 {
    %c0_i32 = arith.constant 0 : i32
    %c0_i32_0 = arith.constant 0 : i32
    return %c0_i32 : i32
  }
  func.func @transform_1(%arg0: i32) -> (i32, i32, i32) {
    %c0_i32 = arith.constant 0 : i32
    %c0_i32_0 = arith.constant 0 : i32
    %c0_i32_1 = arith.constant 0 : i32
    return %arg0, %c0_i32, %c0_i32_0 : i32, i32, i32
  }
  func.func @transform_2(%arg0: i32) -> (i32, i32, i32) {
    %c0_i32 = arith.constant 0 : i32
    %c0_i32_0 = arith.constant 0 : i32
    %c0_i32_1 = arith.constant 0 : i32
    return %arg0, %c0_i32, %c0_i32_0 : i32, i32, i32
  }
  func.func @transform_3(%arg0: i32) -> (i32, i32) {
    %c0_i32 = arith.constant 0 : i32
    %c0_i32_0 = arith.constant 0 : i32
    %c0_i32_1 = arith.constant 0 : i32
    return %c0_i32, %c0_i32_0 : i32, i32
  }
  func.func @transform_4(%arg0: i32) -> (i32, i32) {
    %c0_i32 = arith.constant 0 : i32
    %c0_i32_0 = arith.constant 0 : i32
    %c0_i32_1 = arith.constant 0 : i32
    return %c0_i32, %c0_i32_0 : i32, i32
  }
  func.func @transform_5(%arg0: i32) -> (i32, i32) {
    %c0_i32 = arith.constant 0 : i32
    %c0_i32_0 = arith.constant 0 : i32
    %c0_i32_1 = arith.constant 0 : i32
    return %c0_i32, %c0_i32_0 : i32, i32
  }
  func.func @transform_6(%arg0: i32) -> (i32, i32) {
    %c0_i32 = arith.constant 0 : i32
    %c0_i32_0 = arith.constant 0 : i32
    %c0_i32_1 = arith.constant 0 : i32
    return %c0_i32, %c0_i32_0 : i32, i32
  }
  func.func @transform_7(%arg0: i32) -> (i32, i32) {
    %c0_i32 = arith.constant 0 : i32
    %c0_i32_0 = arith.constant 0 : i32
    %c0_i32_1 = arith.constant 0 : i32
    return %c0_i32, %c0_i32_0 : i32, i32
  }
  func.func @transform_8(%arg0: i32) -> (i32, i32) {
    %c0_i32 = arith.constant 0 : i32
    %c0_i32_0 = arith.constant 0 : i32
    %c0_i32_1 = arith.constant 0 : i32
    return %c0_i32, %c0_i32_0 : i32, i32
  }
  func.func @transform_9(%arg0: i32) -> (i32, i32) {
    %c0_i32 = arith.constant 0 : i32
    %c0_i32_0 = arith.constant 0 : i32
    %c0_i32_1 = arith.constant 0 : i32
    return %c0_i32, %c0_i32_0 : i32, i32
  }
  func.func @transform_10(%arg0: i32) -> (i32, i32) {
    %c0_i32 = arith.constant 0 : i32
    %c0_i32_0 = arith.constant 0 : i32
    %c0_i32_1 = arith.constant 0 : i32
    return %c0_i32, %c0_i32_0 : i32, i32
  }
  func.func @transform_11(%arg0: i32) -> (i32, i32) {
    %c0_i32 = arith.constant 0 : i32
    %c0_i32_0 = arith.constant 0 : i32
    %c0_i32_1 = arith.constant 0 : i32
    return %c0_i32, %c0_i32_0 : i32, i32
  }
  func.func @transform_12(%arg0: i32) -> (i32, i32) {
    %c0_i32 = arith.constant 0 : i32
    %c0_i32_0 = arith.constant 0 : i32
    %c0_i32_1 = arith.constant 0 : i32
    return %c0_i32, %c0_i32_0 : i32, i32
  }
  func.func @transform_13(%arg0: i32) -> (i32, i32) {
    %c0_i32 = arith.constant 0 : i32
    %c0_i32_0 = arith.constant 0 : i32
    %c0_i32_1 = arith.constant 0 : i32
    return %c0_i32, %c0_i32_0 : i32, i32
  }
  func.func @transform_14(%arg0: i32) -> (i32, i32) {
    %c0_i32 = arith.constant 0 : i32
    %c0_i32_0 = arith.constant 0 : i32
    %c0_i32_1 = arith.constant 0 : i32
    return %c0_i32, %c0_i32_0 : i32, i32
  }
  func.func @transform_15(%arg0: i32) -> (i32, i32) {
    %c0_i32 = arith.constant 0 : i32
    %c0_i32_0 = arith.constant 0 : i32
    %c0_i32_1 = arith.constant 0 : i32
    return %c0_i32, %c0_i32_0 : i32, i32
  }
  func.func @transform_16(%arg0: i32) -> (i32, i32) {
    %c0_i32 = arith.constant 0 : i32
    %c0_i32_0 = arith.constant 0 : i32
    %c0_i32_1 = arith.constant 0 : i32
    return %c0_i32, %c0_i32_0 : i32, i32
  }
  func.func @transform_17(%arg0: i32) -> (i32, i32) {
    %c0_i32 = arith.constant 0 : i32
    %c0_i32_0 = arith.constant 0 : i32
    %c0_i32_1 = arith.constant 0 : i32
    return %c0_i32, %c0_i32_0 : i32, i32
  }
  func.func @transform_18(%arg0: i32) -> (i32, i32) {
    %c0_i32 = arith.constant 0 : i32
    %c0_i32_0 = arith.constant 0 : i32
    %c0_i32_1 = arith.constant 0 : i32
    return %c0_i32, %c0_i32_0 : i32, i32
  }
  func.func @transform_19(%arg0: i32) -> (i32, i32) {
    %c0_i32 = arith.constant 0 : i32
    %c0_i32_0 = arith.constant 0 : i32
    %c0_i32_1 = arith.constant 0 : i32
    return %c0_i32, %c0_i32_0 : i32, i32
  }
  func.func @transform_20(%arg0: i32) -> (i32, i32) {
    %c0_i32 = arith.constant 0 : i32
    %c0_i32_0 = arith.constant 0 : i32
    %c0_i32_1 = arith.constant 0 : i32
    return %c0_i32, %c0_i32_0 : i32, i32
  }
  func.func @transform_21(%arg0: i32) -> (i32, i32) {
    %c0_i32 = arith.constant 0 : i32
    %c0_i32_0 = arith.constant 0 : i32
    %c0_i32_1 = arith.constant 0 : i32
    return %c0_i32, %c0_i32_0 : i32, i32
  }
  func.func @transform_22(%arg0: i32) -> (i32, i32) {
    %c0_i32 = arith.constant 0 : i32
    %c0_i32_0 = arith.constant 0 : i32
    %c0_i32_1 = arith.constant 0 : i32
    return %c0_i32, %c0_i32_0 : i32, i32
  }
  func.func @transform_23(%arg0: i32) -> (i32, i32) {
    %c0_i32 = arith.constant 0 : i32
    %c0_i32_0 = arith.constant 0 : i32
    %c0_i32_1 = arith.constant 0 : i32
    return %c0_i32, %c0_i32_0 : i32, i32
  }
  func.func @transform_24(%arg0: i32) -> (i32, i32) {
    %c0_i32 = arith.constant 0 : i32
    %c0_i32_0 = arith.constant 0 : i32
    %c0_i32_1 = arith.constant 0 : i32
    return %c0_i32, %c0_i32_0 : i32, i32
  }
  func.func @transform_25(%arg0: i32) -> (i32, i32) {
    %c0_i32 = arith.constant 0 : i32
    %c0_i32_0 = arith.constant 0 : i32
    %c0_i32_1 = arith.constant 0 : i32
    return %c0_i32, %c0_i32_0 : i32, i32
  }
  func.func @transform_26(%arg0: i32) -> (i32, i32) {
    %c0_i32 = arith.constant 0 : i32
    %c0_i32_0 = arith.constant 0 : i32
    %c0_i32_1 = arith.constant 0 : i32
    return %c0_i32, %c0_i32_0 : i32, i32
  }
  func.func @transform_27(%arg0: i32) -> (i32, i32) {
    %c0_i32 = arith.constant 0 : i32
    %c0_i32_0 = arith.constant 0 : i32
    %c0_i32_1 = arith.constant 0 : i32
    return %c0_i32, %c0_i32_0 : i32, i32
  }
  func.func @transform_28(%arg0: i32) -> (i32, i32) {
    %c0_i32 = arith.constant 0 : i32
    %c0_i32_0 = arith.constant 0 : i32
    %c0_i32_1 = arith.constant 0 : i32
    return %c0_i32, %c0_i32_0 : i32, i32
  }
  func.func @transform_29(%arg0: i32) -> (i32, i32) {
    %c0_i32 = arith.constant 0 : i32
    %c0_i32_0 = arith.constant 0 : i32
    return %arg0, %c0_i32 : i32, i32
  }
}

</mosaic_0001>

<llo_original>
// kernel: gnn_forward.1
$region0: #{gnn_forward.1}
  #allocation0 [shape = 'u32[]', space=smem, size = 0x4, offset = 0x4, fixed_abs, tag = 'smem constant byte address 0x4 - core index']
  #allocation1 [shape = 'u32[144,128]{1,0:T(1,128)}', space=vmem, size = 0x12000, scoped, tag = 'internal scratch']
  %s0 = inlined_call_operand.smem [shape: u32[30], index: -1, kind: input, shape index: {}]
  %s1 = sld [smem:[%s0]]
  %s2 = scalar_lea.smem %s0, 1
  %s3 = sld [smem:[%s2]]
  %s4 = scalar_lea.smem %s0, 2
  %s5 = sld [smem:[%s4]]
  %s6 = scalar_lea.smem %s0, 3
  %s7 = sld [smem:[%s6]]
  %s8 = scalar_lea.smem %s0, 4
  %s9 = sld [smem:[%s8]]
  %s10 = scalar_lea.smem %s0, 5
  %s11 = sld [smem:[%s10]]
  %s12 = scalar_lea.smem %s0, 6
  %s13 = sld [smem:[%s12]]
  %s14 = scalar_lea.smem %s0, 7
  %s15 = sld [smem:[%s14]]
  %s16 = scalar_lea.smem %s0, 8
  %s17 = sld [smem:[%s16]]
  %s18 = scalar_lea.smem %s0, 9
  %s19 = sld [smem:[%s18]]
  %s20 = scalar_lea.smem %s0, 10
  %s21 = sld [smem:[%s20]]
  %s22 = scalar_lea.smem %s0, 11
  %s23 = sld [smem:[%s22]]
  %s24 = scalar_lea.smem %s0, 12
  %s25 = sld [smem:[%s24]]
  %s26 = scalar_lea.smem %s0, 13
  %s27 = sld [smem:[%s26]]
  %s28 = scalar_lea.smem %s0, 14
  %s29 = sld [smem:[%s28]]
  %s30 = scalar_lea.smem %s0, 15
  %s31 = sld [smem:[%s30]]
  %s32 = scalar_lea.smem %s0, 16
  %s33 = sld [smem:[%s32]]
  %s34 = scalar_lea.smem %s0, 17
  %s35 = sld [smem:[%s34]]
  %s36 = scalar_lea.smem %s0, 18
  %s37 = sld [smem:[%s36]]
  %s38 = scalar_lea.smem %s0, 19
  %s39 = sld [smem:[%s38]]
  %s40 = scalar_lea.smem %s0, 20
  %s41 = sld [smem:[%s40]]
  %s42 = scalar_lea.smem %s0, 21
  %s43 = sld [smem:[%s42]]
  %s44 = scalar_lea.smem %s0, 22
  %s45 = sld [smem:[%s44]]
  %s46 = scalar_lea.smem %s0, 23
  %s47 = sld [smem:[%s46]]
  %s48 = scalar_lea.smem %s0, 24
  %s49 = sld [smem:[%s48]]
  %s50 = scalar_lea.smem %s0, 25
  %s51 = sld [smem:[%s50]]
  %s52 = scalar_lea.smem %s0, 26
  %s53 = sld [smem:[%s52]]
  %s54 = scalar_lea.smem %s0, 27
  %s55 = sld [smem:[%s54]]
  %s56 = scalar_lea.smem %s0, 28
  %s57 = sld [smem:[%s56]]
  %s58 = scalar_lea.smem %s0, 29
  %s59 = sld [smem:[%s58]]
  %s60 = sld [smem:[#allocation0]]
  $region130: #{gnn_forward.1} parent=0
    _
  %s62 = ssub.s32 1, %s60
  %s63 = scalar_select 0, %s62, %s60
  $region1: #{gnn_forward.1} parent=0
    #allocation2 [shape = 'u8[512]{0}', space=smem, size = 0x200, scoped, tag = 'input window, operand 0, single buffered']
    #allocation3 [shape = 's32[1]{0}', space=sflag, size = 0x4, scoped, tag = 'scoped memory for gnn_forward.1']
    #allocation4 [shape = 's32[1]{0}', space=sflag, size = 0x4, scoped, tag = 'scoped memory for gnn_forward.1']
    #allocation5 [shape = 'u8[1024]{0}', space=vmem, size = 0x400, scoped, tag = 'output window, operand 0, single buffered']
    %64 = vsyncpa [#allocation4], 0
    %65 = vsyncpa [#allocation3], 0
    // Predicated region
    $region2: #{gnn_forward.1} parent=1 // pred_check
      _
    $region3: #{gnn_forward.1} parent=1 // pred_check_branch
      %67 = sbr.rel (0) target = $region5
    $region4: #{gnn_forward.1} parent=1 // pred_region
      %s69 = ssub.s32 16, 16
      %70 = vsyncadd [#allocation4], %s69
      %s72 = sshll.u32 %s1, 4
      %s73 = int_to_ptr.vmem [resolvable:$true] %s72
      %75 = dma.vmem_to_smem %s73, 16, [#allocation2], [#allocation4]
    $region5: #{gnn_forward.1} parent=1 // pred_fallthru
      _
    // Predicated region
    $region6: #{gnn_forward.1} parent=1 // pred_check
      _
    $region7: #{gnn_forward.1} parent=1 // pred_check_branch
      %77 = sbr.rel (0) target = $region9
    $region8: #{gnn_forward.1} parent=1 // pred_region
      _
    $region9: #{gnn_forward.1} parent=1 // pred_fallthru
      _
    // Predicated region
    $region10: #{gnn_forward.1} parent=1 // pred_check
      _
    $region11: #{gnn_forward.1} parent=1 // pred_check_branch
      %79 = sbr.rel (0) target = $region13
    $region12: #{gnn_forward.1} parent=1 // pred_region
      _
    $region13: #{gnn_forward.1} parent=1 // pred_fallthru
      _
    // Predicated region
    $region14: #{gnn_forward.1} parent=1 // pred_check
      _
    $region15: #{gnn_forward.1} parent=1 // pred_check_branch
      %81 = sbr.rel (0) target = $region17
    $region16: #{gnn_forward.1} parent=1 // pred_region
      _
    $region17: #{gnn_forward.1} parent=1 // pred_fallthru
      _
    // Predicated region
    $region18: #{gnn_forward.1} parent=1 // pred_check
      _
    $region19: #{gnn_forward.1} parent=1 // pred_check_branch
      %83 = sbr.rel (0) target = $region21
    $region20: #{gnn_forward.1} parent=1 // pred_region
      _
    $region21: #{gnn_forward.1} parent=1 // pred_fallthru
      _
    // Predicated region
    $region22: #{gnn_forward.1} parent=1 // pred_check
      _
    $region23: #{gnn_forward.1} parent=1 // pred_check_branch
      %85 = sbr.rel (0) target = $region25
    $region24: #{gnn_forward.1} parent=1 // pred_region
      _
    $region25: #{gnn_forward.1} parent=1 // pred_fallthru
      _
    // Predicated region
    $region26: #{gnn_forward.1} parent=1 // pred_check
      _
    $region27: #{gnn_forward.1} parent=1 // pred_check_branch
      %87 = sbr.rel (0) target = $region29
    $region28: #{gnn_forward.1} parent=1 // pred_region
      _
    $region29: #{gnn_forward.1} parent=1 // pred_fallthru
      _
    // Predicated region
    $region30: #{gnn_forward.1} parent=1 // pred_check
      _
    $region31: #{gnn_forward.1} parent=1 // pred_check_branch
      %89 = sbr.rel (0) target = $region33
    $region32: #{gnn_forward.1} parent=1 // pred_region
      _
    $region33: #{gnn_forward.1} parent=1 // pred_fallthru
      _
    // Predicated region
    $region34: #{gnn_forward.1} parent=1 // pred_check
      _
    $region35: #{gnn_forward.1} parent=1 // pred_check_branch
      %91 = sbr.rel (0) target = $region37
    $region36: #{gnn_forward.1} parent=1 // pred_region
      _
    $region37: #{gnn_forward.1} parent=1 // pred_fallthru
      _
    // Predicated region
    $region38: #{gnn_forward.1} parent=1 // pred_check
      _
    $region39: #{gnn_forward.1} parent=1 // pred_check_branch
      %93 = sbr.rel (0) target = $region41
    $region40: #{gnn_forward.1} parent=1 // pred_region
      _
    $region41: #{gnn_forward.1} parent=1 // pred_fallthru
      _
    // Predicated region
    $region42: #{gnn_forward.1} parent=1 // pred_check
      _
    $region43: #{gnn_forward.1} parent=1 // pred_check_branch
      %95 = sbr.rel (0) target = $region45
    $region44: #{gnn_forward.1} parent=1 // pred_region
      _
    $region45: #{gnn_forward.1} parent=1 // pred_fallthru
      _
    // Predicated region
    $region46: #{gnn_forward.1} parent=1 // pred_check
      _
    $region47: #{gnn_forward.1} parent=1 // pred_check_branch
      %97 = sbr.rel (0) target = $region49
    $region48: #{gnn_forward.1} parent=1 // pred_region
      _
    $region49: #{gnn_forward.1} parent=1 // pred_fallthru
      _
    // Predicated region
    $region50: #{gnn_forward.1} parent=1 // pred_check
      _
    $region51: #{gnn_forward.1} parent=1 // pred_check_branch
      %99 = sbr.rel (0) target = $region53
    $region52: #{gnn_forward.1} parent=1 // pred_region
      _
    $region53: #{gnn_forward.1} parent=1 // pred_fallthru
      _
    // Predicated region
    $region54: #{gnn_forward.1} parent=1 // pred_check
      _
    $region55: #{gnn_forward.1} parent=1 // pred_check_branch
      %101 = sbr.rel (0) target = $region57
    $region56: #{gnn_forward.1} parent=1 // pred_region
      _
    $region57: #{gnn_forward.1} parent=1 // pred_fallthru
      _
    // Predicated region
    $region58: #{gnn_forward.1} parent=1 // pred_check
      _
    $region59: #{gnn_forward.1} parent=1 // pred_check_branch
      %103 = sbr.rel (0) target = $region61
    $region60: #{gnn_forward.1} parent=1 // pred_region
      _
    $region61: #{gnn_forward.1} parent=1 // pred_fallthru
      _
    // Predicated region
    $region62: #{gnn_forward.1} parent=1 // pred_check
      _
    $region63: #{gnn_forward.1} parent=1 // pred_check_branch
      %105 = sbr.rel (0) target = $region65
    $region64: #{gnn_forward.1} parent=1 // pred_region
      _
    $region65: #{gnn_forward.1} parent=1 // pred_fallthru
      _
    // Predicated region
    $region66: #{gnn_forward.1} parent=1 // pred_check
      _
    $region67: #{gnn_forward.1} parent=1 // pred_check_branch
      %107 = sbr.rel (0) target = $region69
    $region68: #{gnn_forward.1} parent=1 // pred_region
      _
    $region69: #{gnn_forward.1} parent=1 // pred_fallthru
      _
    // Predicated region
    $region70: #{gnn_forward.1} parent=1 // pred_check
      _
    $region71: #{gnn_forward.1} parent=1 // pred_check_branch
      %109 = sbr.rel (0) target = $region73
    $region72: #{gnn_forward.1} parent=1 // pred_region
      _
    $region73: #{gnn_forward.1} parent=1 // pred_fallthru
      _
    // Predicated region
    $region74: #{gnn_forward.1} parent=1 // pred_check
      _
    $region75: #{gnn_forward.1} parent=1 // pred_check_branch
      %111 = sbr.rel (0) target = $region77
    $region76: #{gnn_forward.1} parent=1 // pred_region
      _
    $region77: #{gnn_forward.1} parent=1 // pred_fallthru
      _
    // Predicated region
    $region78: #{gnn_forward.1} parent=1 // pred_check
      _
    $region79: #{gnn_forward.1} parent=1 // pred_check_branch
      %113 = sbr.rel (0) target = $region81
    $region80: #{gnn_forward.1} parent=1 // pred_region
      _
    $region81: #{gnn_forward.1} parent=1 // pred_fallthru
      _
    // Predicated region
    $region82: #{gnn_forward.1} parent=1 // pred_check
      _
    $region83: #{gnn_forward.1} parent=1 // pred_check_branch
      %115 = sbr.rel (0) target = $region85
    $region84: #{gnn_forward.1} parent=1 // pred_region
      _
    $region85: #{gnn_forward.1} parent=1 // pred_fallthru
      _
    // Predicated region
    $region86: #{gnn_forward.1} parent=1 // pred_check
      _
    $region87: #{gnn_forward.1} parent=1 // pred_check_branch
      %117 = sbr.rel (0) target = $region89
    $region88: #{gnn_forward.1} parent=1 // pred_region
      _
    $region89: #{gnn_forward.1} parent=1 // pred_fallthru
      _
    // Predicated region
    $region90: #{gnn_forward.1} parent=1 // pred_check
      _
    $region91: #{gnn_forward.1} parent=1 // pred_check_branch
      %119 = sbr.rel (0) target = $region93
    $region92: #{gnn_forward.1} parent=1 // pred_region
      _
    $region93: #{gnn_forward.1} parent=1 // pred_fallthru
      _
    // Predicated region
    $region94: #{gnn_forward.1} parent=1 // pred_check
      _
    $region95: #{gnn_forward.1} parent=1 // pred_check_branch
      %121 = sbr.rel (0) target = $region97
    $region96: #{gnn_forward.1} parent=1 // pred_region
      _
    $region97: #{gnn_forward.1} parent=1 // pred_fallthru
      _
    // Predicated region
    $region98: #{gnn_forward.1} parent=1 // pred_check
      _
    $region99: #{gnn_forward.1} parent=1 // pred_check_branch
      %123 = sbr.rel (0) target = $region101
    $region100: #{gnn_forward.1} parent=1 // pred_region
      _
    $region101: #{gnn_forward.1} parent=1 // pred_fallthru
      _
    // Predicated region
    $region102: #{gnn_forward.1} parent=1 // pred_check
      _
    $region103: #{gnn_forward.1} parent=1 // pred_check_branch
      %125 = sbr.rel (0) target = $region105
    $region104: #{gnn_forward.1} parent=1 // pred_region
      _
    $region105: #{gnn_forward.1} parent=1 // pred_fallthru
      _
    // Predicated region
    $region106: #{gnn_forward.1} parent=1 // pred_check
      _
    $region107: #{gnn_forward.1} parent=1 // pred_check_branch
      %127 = sbr.rel (0) target = $region109
    $region108: #{gnn_forward.1} parent=1 // pred_region
      _
    $region109: #{gnn_forward.1} parent=1 // pred_fallthru
      _
    // Predicated region
    $region110: #{gnn_forward.1} parent=1 // pred_check
      _
    $region111: #{gnn_forward.1} parent=1 // pred_check_branch
      %129 = sbr.rel (0) target = $region113
    $region112: #{gnn_forward.1} parent=1 // pred_region
      _
    $region113: #{gnn_forward.1} parent=1 // pred_fallthru
      _
    // Predicated region
    $region114: #{gnn_forward.1} parent=1 // pred_check
      _
    $region115: #{gnn_forward.1} parent=1 // pred_check_branch
      %131 = sbr.rel (0) target = $region117
    $region116: #{gnn_forward.1} parent=1 // pred_region
      _
    $region117: #{gnn_forward.1} parent=1 // pred_fallthru
      _
    // Predicated region
    $region118: #{gnn_forward.1} parent=1 // pred_check
      _
    $region119: #{gnn_forward.1} parent=1 // pred_check_branch
      %133 = sbr.rel (0) target = $region121
    $region120: #{gnn_forward.1} parent=1 // pred_region
      %134 = dma.done [#allocation4], 16
    $region121: #{gnn_forward.1} parent=1 // pred_fallthru
      _
    %135 = sfence
    %v136 = vld [vmem:[%s3] sm:$0xff]
    %v137 = vld [vmem:[%s3 + $0x8] sm:$0xff]
    %v138 = vlaneseq
    %v139 = vshrl.u32 %v138, 7
    %v140 = vlaneseq
    %v141 = vand.u32 %v140, 127
    %vm142 = vcmp.eq.s32.totalorder %v139, %v141
    %v143 = vsel %vm142, 1, 0
    %vm144 = vcmp.eq.s32.totalorder %v143, 1
    %v145 = vsel %vm144, %v136, 0.0
    %v146 = vsel %vm144, %v137, 0.0
    %vm147 = vcmask 64512
    %v148 = vsel %vm147, %v145, 0.0
    %149 = vadd.xlane.f32.xlu0 %v148
    %v150 = vpop.xlane.xlu0 %149
    %v151 = vsel %vm147, %v146, 0.0
    %152 = vadd.xlane.f32.xlu0 %v151
    %v153 = vpop.xlane.xlu0 %152
    %v154 = vld [vmem:[%s5] sm:$0xff]
    %v155 = vld [vmem:[%s5 + $0x8] sm:$0xff]
    %vm156 = vcmask 130048
    %v157 = vsel %vm156, %v154, 0.0
    %v158 = vrot.slane %v157, 4
    %v159 = vadd.f32 %v157, %v158
    %v160 = vrot.slane %v159, 2
    %v161 = vadd.f32 %v159, %v160
    %v162 = vrot.slane %v161, 1
    %v163 = vadd.f32 %v161, %v162
    %v164 = vsel %vm156, %v155, 0.0
    %v165 = vrot.slane %v164, 4
    %v166 = vadd.f32 %v164, %v165
    %v167 = vrot.slane %v166, 2
    %v168 = vadd.f32 %v166, %v167
    %v169 = vrot.slane %v168, 1
    %v170 = vadd.f32 %v168, %v169
    %s171 = sld [smem:[#allocation2]]
    %v172 = vld [vmem:[%s11] sm:$0xff]
    %s173 = ssub.f32 %s171, 1.0
    %v174 = vmul.f32 %v150, %v154
    %v175 = vmul.f32 %v153, %v155
    %v176 = vstv %s173
    %v177 = vmul.f32 %v176, %v174
    %v178 = vmul.f32 %v176, %v175
    %v180 = vsel %vm147, %v136, 0
    %182 = vmatprep.subr.mxu0 0.0
    %183 = vmatpush1.msra.mxu0 %v154
    %184 = vmatprep.subr.mxu0 0.0
    %185 = vmatpush1.msra.mxu0 0.0
    %186 = vmatprep.subr.mxu0 0.0
    %187 = vmatpush1.msra.mxu0 0.0
    %188 = vmatprep.subr.mxu0 0.0
    %189 = vmatpush1.msra.mxu0 0.0
    %190 = vmatprep.subr.mxu0 0.0
    %191 = vmatpush1.msra.mxu0 0.0
    %192 = vmatprep.subr.mxu0 0.0
    %193 = vmatpush1.msra.mxu0 0.0
    %194 = vmatprep.subr.mxu0 0.0
    %195 = vmatpush1.msra.mxu0 0.0
    %196 = vmatprep.subr.mxu0 0.0
    %197 = vmatpush1.msra.mxu0 0.0
    %198 = vmatprep.subr.mxu0 0.0
    %199 = vmatpush1.msra.mxu0 0.0
    %200 = vmatprep.subr.mxu0 0.0
    %201 = vmatpush1.msra.mxu0 0.0
    %202 = vmatprep.subr.mxu0 0.0
    %203 = vmatpush1.msra.mxu0 0.0
    %204 = vmatprep.subr.mxu0 0.0
    %205 = vmatpush1.msra.mxu0 0.0
    %206 = vmatprep.subr.mxu0 0.0
    %207 = vmatpush1.msra.mxu0 0.0
    %208 = vmatprep.subr.mxu0 0.0
    %209 = vmatpush1.msra.mxu0 0.0
    %210 = vmatprep.subr.mxu0 0.0
    %211 = vmatpush1.msra.mxu0 0.0
    %212 = vmatprep.subr.mxu0 0.0
    %213 = vmatpush1.msra.mxu0 0.0
    %214 = vmatprep.subr.mxu0 0.0
    %215 = vmatpush1.msra.mxu0 0.0
    %216 = vmatprep.subr.mxu0 0.0
    %217 = vmatpush1.msra.mxu0 0.0
    %218 = vmatprep.subr.mxu0 0.0
    %219 = vmatpush1.msra.mxu0 0.0
    %220 = vmatprep.subr.mxu0 0.0
    %221 = vmatpush1.msra.mxu0 0.0
    %222 = vmatprep.subr.mxu0 0.0
    %223 = vmatpush1.msra.mxu0 0.0
    %224 = vmatprep.subr.mxu0 0.0
    %225 = vmatpush1.msra.mxu0 0.0
    %226 = vmatprep.subr.mxu0 0.0
    %227 = vmatpush1.msra.mxu0 0.0
    %228 = vmatprep.subr.mxu0 0.0
    %229 = vmatpush1.msra.mxu0 0.0
    %230 = vmatprep.subr.mxu0 0.0
    %231 = vmatpush1.msra.mxu0 0.0
    %232 = vmatprep.subr.mxu0 0.0
    %233 = vmatpush1.msra.mxu0 0.0
    %234 = vmatprep.subr.mxu0 0.0
    %235 = vmatpush1.msra.mxu0 0.0
    %236 = vmatprep.subr.mxu0 0.0
    %237 = vmatpush1.msra.mxu0 0.0
    %238 = vmatprep.subr.mxu0 0.0
    %239 = vmatpush1.msra.mxu0 0.0
    %240 = vmatprep.subr.mxu0 0.0
    %241 = vmatpush1.msra.mxu0 0.0
    %242 = vmatprep.subr.mxu0 0.0
    %243 = vmatpush1.msra.mxu0 0.0
    %244 = vmatprep.subr.mxu0 0.0
    %245 = vmatpush1.msra.mxu0 0.0
    %246 = vmatprep.mubr.f32.mxu0 0.0
    %247 = vmatmul.mubr.f32.gmra.mrb[0].mxu0 %v180
    %v248 = vpop.f32.mrb[0].mxu0
    %v249 = vadd.f32 %v177, %v248
    %v250 = vpop.f32.mrb[0].mxu0
    %251 = vdwg.mxu0
    %v253 = vsel %vm147, %v137, 0
    %255 = vmatprep.subr.mxu0 0.0
    %256 = vmatpush1.msra.mxu0 %v155
    %257 = vmatprep.subr.mxu0 0.0
    %258 = vmatpush1.msra.mxu0 0.0
    %259 = vmatprep.subr.mxu0 0.0
    %260 = vmatpush1.msra.mxu0 0.0
    %261 = vmatprep.subr.mxu0 0.0
    %262 = vmatpush1.msra.mxu0 0.0
    %263 = vmatprep.subr.mxu0 0.0
    %264 = vmatpush1.msra.mxu0 0.0
    %265 = vmatprep.subr.mxu0 0.0
    %266 = vmatpush1.msra.mxu0 0.0
    %267 = vmatprep.subr.mxu0 0.0
    %268 = vmatpush1.msra.mxu0 0.0
    %269 = vmatprep.subr.mxu0 0.0
    %270 = vmatpush1.msra.mxu0 0.0
    %271 = vmatprep.subr.mxu0 0.0
    %272 = vmatpush1.msra.mxu0 0.0
    %273 = vmatprep.subr.mxu0 0.0
    %274 = vmatpush1.msra.mxu0 0.0
    %275 = vmatprep.subr.mxu0 0.0
    %276 = vmatpush1.msra.mxu0 0.0
    %277 = vmatprep.subr.mxu0 0.0
    %278 = vmatpush1.msra.mxu0 0.0
    %279 = vmatprep.subr.mxu0 0.0
    %280 = vmatpush1.msra.mxu0 0.0
    %281 = vmatprep.subr.mxu0 0.0
    %282 = vmatpush1.msra.mxu0 0.0
    %283 = vmatprep.subr.mxu0 0.0
    %284 = vmatpush1.msra.mxu0 0.0
    %285 = vmatprep.subr.mxu0 0.0
    %286 = vmatpush1.msra.mxu0 0.0
    %287 = vmatprep.subr.mxu0 0.0
    %288 = vmatpush1.msra.mxu0 0.0
    %289 = vmatprep.subr.mxu0 0.0
    %290 = vmatpush1.msra.mxu0 0.0
    %291 = vmatprep.subr.mxu0 0.0
    %292 = vmatpush1.msra.mxu0 0.0
    %293 = vmatprep.subr.mxu0 0.0
    %294 = vmatpush1.msra.mxu0 0.0
    %295 = vmatprep.subr.mxu0 0.0
    %296 = vmatpush1.msra.mxu0 0.0
    %297 = vmatprep.subr.mxu0 0.0
    %298 = vmatpush1.msra.mxu0 0.0
    %299 = vmatprep.subr.mxu0 0.0
    %300 = vmatpush1.msra.mxu0 0.0
    %301 = vmatprep.subr.mxu0 0.0
    %302 = vmatpush1.msra.mxu0 0.0
    %303 = vmatprep.subr.mxu0 0.0
    %304 = vmatpush1.msra.mxu0 0.0
    %305 = vmatprep.subr.mxu0 0.0
    %306 = vmatpush1.msra.mxu0 0.0
    %307 = vmatprep.subr.mxu0 0.0
    %308 = vmatpush1.msra.mxu0 0.0
    %309 = vmatprep.subr.mxu0 0.0
    %310 = vmatpush1.msra.mxu0 0.0
    %311 = vmatprep.subr.mxu0 0.0
    %312 = vmatpush1.msra.mxu0 0.0
    %313 = vmatprep.subr.mxu0 0.0
    %314 = vmatpush1.msra.mxu0 0.0
    %315 = vmatprep.subr.mxu0 0.0
    %316 = vmatpush1.msra.mxu0 0.0
    %317 = vmatprep.subr.mxu0 0.0
    %318 = vmatpush1.msra.mxu0 0.0
    %319 = vmatprep.mubr.f32.mxu0 0.0
    %320 = vmatmul.mubr.f32.gmra.mrb[0].mxu0 %v253
    %v321 = vpop.f32.mrb[0].mxu0
    %v322 = vadd.f32 %v178, %v321
    %v323 = vpop.f32.mrb[0].mxu0
    %324 = vdwg.mxu0
    %326 = vset.pattern.permute.xlu0 0
    %327 = vperm.xlu0 %326, %v172
    %v328 = vpop.permute.xlu0 %327
    %v330 = vmul.f32 %v328, %v249
    %v331 = vmul.f32 %v328, %v322
    %v332 = vld [vmem:[%s7] sm:$0xff]
    %v333 = vld [vmem:[%s7 + $0x8] sm:$0xff]
    %v335 = vsel %vm156, %v330, 0
    %v338 = vsel %vm156, %v331, 0
    %340 = vmatprep.subr.mxu0 0.0
    %341 = vmatpush1.msra.mxu0 %v332
    %342 = vmatprep.subr.mxu0 0.0
    %343 = vmatpush1.msra.mxu0 %v333
    %344 = vmatprep.subr.mxu0 0.0
    %345 = vmatpush1.msra.mxu0 0.0
    %346 = vmatprep.subr.mxu0 0.0
    %347 = vmatpush1.msra.mxu0 0.0
    %348 = vmatprep.subr.mxu0 0.0
    %349 = vmatpush1.msra.mxu0 0.0
    %350 = vmatprep.subr.mxu0 0.0
    %351 = vmatpush1.msra.mxu0 0.0
    %352 = vmatprep.subr.mxu0 0.0
    %353 = vmatpush1.msra.mxu0 0.0
    %354 = vmatprep.subr.mxu0 0.0
    %355 = vmatpush1.msra.mxu0 0.0
    %356 = vmatprep.subr.mxu0 0.0
    %357 = vmatpush1.msra.mxu0 0.0
    %358 = vmatprep.subr.mxu0 0.0
    %359 = vmatpush1.msra.mxu0 0.0
    %360 = vmatprep.subr.mxu0 0.0
    %361 = vmatpush1.msra.mxu0 0.0
    %362 = vmatprep.subr.mxu0 0.0
    %363 = vmatpush1.msra.mxu0 0.0
    %364 = vmatprep.subr.mxu0 0.0
    %365 = vmatpush1.msra.mxu0 0.0
    %366 = vmatprep.subr.mxu0 0.0
    %367 = vmatpush1.msra.mxu0 0.0
    %368 = vmatprep.subr.mxu0 0.0
    %369 = vmatpush1.msra.mxu0 0.0
    %370 = vmatprep.subr.mxu0 0.0
    %371 = vmatpush1.msra.mxu0 0.0
    %372 = vmatprep.subr.mxu0 0.0
    %373 = vmatpush1.msra.mxu0 0.0
    %374 = vmatprep.subr.mxu0 0.0
    %375 = vmatpush1.msra.mxu0 0.0
    %376 = vmatprep.subr.mxu0 0.0
    %377 = vmatpush1.msra.mxu0 0.0
    %378 = vmatprep.subr.mxu0 0.0
    %379 = vmatpush1.msra.mxu0 0.0
    %380 = vmatprep.subr.mxu0 0.0
    %381 = vmatpush1.msra.mxu0 0.0
    %382 = vmatprep.subr.mxu0 0.0
    %383 = vmatpush1.msra.mxu0 0.0
    %384 = vmatprep.subr.mxu0 0.0
    %385 = vmatpush1.msra.mxu0 0.0
    %386 = vmatprep.subr.mxu0 0.0
    %387 = vmatpush1.msra.mxu0 0.0
    %388 = vmatprep.subr.mxu0 0.0
    %389 = vmatpush1.msra.mxu0 0.0
    %390 = vmatprep.subr.mxu0 0.0
    %391 = vmatpush1.msra.mxu0 0.0
    %392 = vmatprep.subr.mxu0 0.0
    %393 = vmatpush1.msra.mxu0 0.0
    %394 = vmatprep.subr.mxu0 0.0
    %395 = vmatpush1.msra.mxu0 0.0
    %396 = vmatprep.subr.mxu0 0.0
    %397 = vmatpush1.msra.mxu0 0.0
    %398 = vmatprep.subr.mxu0 0.0
    %399 = vmatpush1.msra.mxu0 0.0
    %400 = vmatprep.subr.mxu0 0.0
    %401 = vmatpush1.msra.mxu0 0.0
    %402 = vmatprep.subr.mxu0 0.0
    %403 = vmatpush1.msra.mxu0 0.0
    %404 = vmatprep.mubr.f32.mxu0 0.0
    %405 = vmatmul.mubr.f32.gmra.mrb[0].mxu0 %v335
    %v406 = vpop.f32.mrb[0].mxu0
    %v407 = vadd.f32 0.0, %v406
    %v408 = vpop.f32.mrb[0].mxu0
    %409 = vmatprep.mubr.f32.mxu0 0.0
    %410 = vmatmul.mubr.f32.gmra.mrb[0].mxu0 %v338
    %v411 = vpop.f32.mrb[0].mxu0
    %v412 = vadd.f32 0.0, %v411
    %v413 = vpop.f32.mrb[0].mxu0
    %414 = vdwg.mxu0
    %v415 = vld [vmem:[%s9] sm:$0xff]
    %v416 = vadd.f32 %v407, %v415
    %v417 = vadd.f32 %v412, %v415
    %v418 = vmax.f32 %v416, 0.0
    %v419 = vmax.f32 %v417, 0.0
    %v420 = vld [vmem:[%s13] sm:$0xff]
    %v421 = vld [vmem:[%s13 + $0x8] sm:$0xff]
    %v422 = vld [vmem:[%s13 + $0x10] sm:$0xff]
    %v423 = vld [vmem:[%s13 + $0x18] sm:$0xff]
    %vm424 = vcmask 261120
    %v426 = vsel %vm424, %v418, 0
    %v429 = vsel %vm424, %v419, 0
    %431 = vmatprep.subr.mxu0 0.0
    %432 = vmatpush1.msra.mxu0 %v420
    %433 = vmatprep.subr.mxu0 0.0
    %434 = vmatpush1.msra.mxu0 %v421
    %435 = vmatprep.subr.mxu0 0.0
    %436 = vmatpush1.msra.mxu0 %v422
    %437 = vmatprep.subr.mxu0 0.0
    %438 = vmatpush1.msra.mxu0 %v423
    %439 = vmatprep.subr.mxu0 0.0
    %440 = vmatpush1.msra.mxu0 0.0
    %441 = vmatprep.subr.mxu0 0.0
    %442 = vmatpush1.msra.mxu0 0.0
    %443 = vmatprep.subr.mxu0 0.0
    %444 = vmatpush1.msra.mxu0 0.0
    %445 = vmatprep.subr.mxu0 0.0
    %446 = vmatpush1.msra.mxu0 0.0
    %447 = vmatprep.subr.mxu0 0.0
    %448 = vmatpush1.msra.mxu0 0.0
    %449 = vmatprep.subr.mxu0 0.0
    %450 = vmatpush1.msra.mxu0 0.0
    %451 = vmatprep.subr.mxu0 0.0
    %452 = vmatpush1.msra.mxu0 0.0
    %453 = vmatprep.subr.mxu0 0.0
    %454 = vmatpush1.msra.mxu0 0.0
    %455 = vmatprep.subr.mxu0 0.0
    %456 = vmatpush1.msra.mxu0 0.0
    %457 = vmatprep.subr.mxu0 0.0
    %458 = vmatpush1.msra.mxu0 0.0
    %459 = vmatprep.subr.mxu0 0.0
    %460 = vmatpush1.msra.mxu0 0.0
    %461 = vmatprep.subr.mxu0 0.0
    %462 = vmatpush1.msra.mxu0 0.0
    %463 = vmatprep.subr.mxu0 0.0
    %464 = vmatpush1.msra.mxu0 0.0
    %465 = vmatprep.subr.mxu0 0.0
    %466 = vmatpush1.msra.mxu0 0.0
    %467 = vmatprep.subr.mxu0 0.0
    %468 = vmatpush1.msra.mxu0 0.0
    %469 = vmatprep.subr.mxu0 0.0
    %470 = vmatpush1.msra.mxu0 0.0
    %471 = vmatprep.subr.mxu0 0.0
    %472 = vmatpush1.msra.mxu0 0.0
    %473 = vmatprep.subr.mxu0 0.0
    %474 = vmatpush1.msra.mxu0 0.0
    %475 = vmatprep.subr.mxu0 0.0
    %476 = vmatpush1.msra.mxu0 0.0
    %477 = vmatprep.subr.mxu0 0.0
    %478 = vmatpush1.msra.mxu0 0.0
    %479 = vmatprep.subr.mxu0 0.0
    %480 = vmatpush1.msra.mxu0 0.0
    %481 = vmatprep.subr.mxu0 0.0
    %482 = vmatpush1.msra.mxu0 0.0
    %483 = vmatprep.subr.mxu0 0.0
    %484 = vmatpush1.msra.mxu0 0.0
    %485 = vmatprep.subr.mxu0 0.0
    %486 = vmatpush1.msra.mxu0 0.0
    %487 = vmatprep.subr.mxu0 0.0
    %488 = vmatpush1.msra.mxu0 0.0
    %489 = vmatprep.subr.mxu0 0.0
    %490 = vmatpush1.msra.mxu0 0.0
    %491 = vmatprep.subr.mxu0 0.0
    %492 = vmatpush1.msra.mxu0 0.0
    %493 = vmatprep.subr.mxu0 0.0
    %494 = vmatpush1.msra.mxu0 0.0
    %495 = vmatprep.mubr.f32.mxu0 0.0
    %496 = vmatmul.mubr.f32.gmra.mrb[0].mxu0 %v426
    %v497 = vpop.f32.mrb[0].mxu0
    %v498 = vadd.f32 0.0, %v497
    %v499 = vpop.f32.mrb[0].mxu0
    %500 = vmatprep.mubr.f32.mxu0 0.0
    %501 = vmatmul.mubr.f32.gmra.mrb[0].mxu0 %v429
    %v502 = vpop.f32.mrb[0].mxu0
    %v503 = vadd.f32 0.0, %v502
    %v504 = vpop.f32.mrb[0].mxu0
    %505 = vdwg.mxu0
    %v506 = vld [vmem:[%s17] sm:$0xff]
    %508 = vset.pattern.permute.xlu0 0
    %509 = vperm.xlu0 %508, %v506
    %v510 = vpop.permute.xlu0 %509
    %v512 = vmul.f32 %v510, %v498
    %v513 = vmul.f32 %v510, %v503
    %v514 = vld [vmem:[%s15] sm:$0xff]
    %v515 = vadd.f32 %v512, %v514
    %v516 = vadd.f32 %v513, %v514
    %v517 = vmax.f32 %v515, 0.0
    %v518 = vmax.f32 %v516, 0.0
    %v519 = vld [vmem:[%s19] sm:$0xff]
    %v520 = vld [vmem:[%s19 + $0x8] sm:$0xff]
    %v521 = vld [vmem:[%s19 + $0x10] sm:$0xff]
    %v522 = vld [vmem:[%s19 + $0x18] sm:$0xff]
    %v524 = vsel %vm424, %v517, 0
    %v527 = vsel %vm424, %v518, 0
    %529 = vmatprep.subr.mxu0 0.0
    %530 = vmatpush1.msra.mxu0 %v519
    %531 = vmatprep.subr.mxu0 0.0
    %532 = vmatpush1.msra.mxu0 %v520
    %533 = vmatprep.subr.mxu0 0.0
    %534 = vmatpush1.msra.mxu0 %v521
    %535 = vmatprep.subr.mxu0 0.0
    %536 = vmatpush1.msra.mxu0 %v522
    %537 = vmatprep.subr.mxu0 0.0
    %538 = vmatpush1.msra.mxu0 0.0
    %539 = vmatprep.subr.mxu0 0.0
    %540 = vmatpush1.msra.mxu0 0.0
    %541 = vmatprep.subr.mxu0 0.0
    %542 = vmatpush1.msra.mxu0 0.0
    %543 = vmatprep.subr.mxu0 0.0
    %544 = vmatpush1.msra.mxu0 0.0
    %545 = vmatprep.subr.mxu0 0.0
    %546 = vmatpush1.msra.mxu0 0.0
    %547 = vmatprep.subr.mxu0 0.0
    %548 = vmatpush1.msra.mxu0 0.0
    %549 = vmatprep.subr.mxu0 0.0
    %550 = vmatpush1.msra.mxu0 0.0
    %551 = vmatprep.subr.mxu0 0.0
    %552 = vmatpush1.msra.mxu0 0.0
    %553 = vmatprep.subr.mxu0 0.0
    %554 = vmatpush1.msra.mxu0 0.0
    %555 = vmatprep.subr.mxu0 0.0
    %556 = vmatpush1.msra.mxu0 0.0
    %557 = vmatprep.subr.mxu0 0.0
    %558 = vmatpush1.msra.mxu0 0.0
    %559 = vmatprep.subr.mxu0 0.0
    %560 = vmatpush1.msra.mxu0 0.0
    %561 = vmatprep.subr.mxu0 0.0
    %562 = vmatpush1.msra.mxu0 0.0
    %563 = vmatprep.subr.mxu0 0.0
    %564 = vmatpush1.msra.mxu0 0.0
    %565 = vmatprep.subr.mxu0 0.0
    %566 = vmatpush1.msra.mxu0 0.0
    %567 = vmatprep.subr.mxu0 0.0
    %568 = vmatpush1.msra.mxu0 0.0
    %569 = vmatprep.subr.mxu0 0.0
    %570 = vmatpush1.msra.mxu0 0.0
    %571 = vmatprep.subr.mxu0 0.0
    %572 = vmatpush1.msra.mxu0 0.0
    %573 = vmatprep.subr.mxu0 0.0
    %574 = vmatpush1.msra.mxu0 0.0
    %575 = vmatprep.subr.mxu0 0.0
    %576 = vmatpush1.msra.mxu0 0.0
    %577 = vmatprep.subr.mxu0 0.0
    %578 = vmatpush1.msra.mxu0 0.0
    %579 = vmatprep.subr.mxu0 0.0
    %580 = vmatpush1.msra.mxu0 0.0
    %581 = vmatprep.subr.mxu0 0.0
    %582 = vmatpush1.msra.mxu0 0.0
    %583 = vmatprep.subr.mxu0 0.0
    %584 = vmatpush1.msra.mxu0 0.0
    %585 = vmatprep.subr.mxu0 0.0
    %586 = vmatpush1.msra.mxu0 0.0
    %587 = vmatprep.subr.mxu0 0.0
    %588 = vmatpush1.msra.mxu0 0.0
    %589 = vmatprep.subr.mxu0 0.0
    %590 = vmatpush1.msra.mxu0 0.0
    %591 = vmatprep.subr.mxu0 0.0
    %592 = vmatpush1.msra.mxu0 0.0
    %593 = vmatprep.mubr.f32.mxu0 0.0
    %594 = vmatmul.mubr.f32.gmra.mrb[0].mxu0 %v524
    %v595 = vpop.f32.mrb[0].mxu0
    %v596 = vadd.f32 0.0, %v595
    %v597 = vpop.f32.mrb[0].mxu0
    %598 = vmatprep.mubr.f32.mxu0 0.0
    %599 = vmatmul.mubr.f32.gmra.mrb[0].mxu0 %v527
    %v600 = vpop.f32.mrb[0].mxu0
    %v601 = vadd.f32 0.0, %v600
    %v602 = vpop.f32.mrb[0].mxu0
    %603 = vdwg.mxu0
    %v604 = vld [vmem:[%s21] sm:$0x1]
    %v606 = vlaneseq
    %v607 = vshrl.u32 %v606, 7
    %v608 = vsub.s32 0, %v607
    %v609 = vrot.slane %v604, %v608
    %v611 = vadd.f32 %v596, %v609
    %v612 = vadd.f32 %v601, %v609
    %v613 = vmax.f32 %v611, 0.0
    %v614 = vmax.f32 %v612, 0.0
    %v615 = vsel %vm424, %v613, 0.0
    %v616 = vrot.slane %v615, 4
    %v617 = vadd.f32 %v615, %v616
    %v618 = vrot.slane %v617, 2
    %v619 = vadd.f32 %v617, %v618
    %v620 = vrot.slane %v619, 1
    %v621 = vadd.f32 %v619, %v620
    %v622 = vsel %vm424, %v614, 0.0
    %v623 = vrot.slane %v622, 4
    %v624 = vadd.f32 %v622, %v623
    %v625 = vrot.slane %v624, 2
    %v626 = vadd.f32 %v624, %v625
    %v627 = vrot.slane %v626, 1
    %v628 = vadd.f32 %v626, %v627
    %s629 = sld [smem:[#allocation2 + $0x1]]
    %v630 = vld [vmem:[%s27] sm:$0xff]
    %s631 = ssub.f32 %s629, 1.0
    %v632 = vmul.f32 %v150, %v613
    %v633 = vmul.f32 %v153, %v614
    %v634 = vstv %s631
    %v635 = vmul.f32 %v634, %v632
    %v636 = vmul.f32 %v634, %v633
    %637 = vmatprep.subr.mxu0 0.0
    %638 = vmatpush1.msra.mxu0 %v613
    %639 = vmatprep.subr.mxu0 0.0
    %640 = vmatpush1.msra.mxu0 0.0
    %641 = vmatprep.subr.mxu0 0.0
    %642 = vmatpush1.msra.mxu0 0.0
    %643 = vmatprep.subr.mxu0 0.0
    %644 = vmatpush1.msra.mxu0 0.0
    %645 = vmatprep.subr.mxu0 0.0
    %646 = vmatpush1.msra.mxu0 0.0
    %647 = vmatprep.subr.mxu0 0.0
    %648 = vmatpush1.msra.mxu0 0.0
    %649 = vmatprep.subr.mxu0 0.0
    %650 = vmatpush1.msra.mxu0 0.0
    %651 = vmatprep.subr.mxu0 0.0
    %652 = vmatpush1.msra.mxu0 0.0
    %653 = vmatprep.subr.mxu0 0.0
    %654 = vmatpush1.msra.mxu0 0.0
    %655 = vmatprep.subr.mxu0 0.0
    %656 = vmatpush1.msra.mxu0 0.0
    %657 = vmatprep.subr.mxu0 0.0
    %658 = vmatpush1.msra.mxu0 0.0
    %659 = vmatprep.subr.mxu0 0.0
    %660 = vmatpush1.msra.mxu0 0.0
    %661 = vmatprep.subr.mxu0 0.0
    %662 = vmatpush1.msra.mxu0 0.0
    %663 = vmatprep.subr.mxu0 0.0
    %664 = vmatpush1.msra.mxu0 0.0
    %665 = vmatprep.subr.mxu0 0.0
    %666 = vmatpush1.msra.mxu0 0.0
    %667 = vmatprep.subr.mxu0 0.0
    %668 = vmatpush1.msra.mxu0 0.0
    %669 = vmatprep.subr.mxu0 0.0
    %670 = vmatpush1.msra.mxu0 0.0
    %671 = vmatprep.subr.mxu0 0.0
    %672 = vmatpush1.msra.mxu0 0.0
    %673 = vmatprep.subr.mxu0 0.0
    %674 = vmatpush1.msra.mxu0 0.0
    %675 = vmatprep.subr.mxu0 0.0
    %676 = vmatpush1.msra.mxu0 0.0
    %677 = vmatprep.subr.mxu0 0.0
    %678 = vmatpush1.msra.mxu0 0.0
    %679 = vmatprep.subr.mxu0 0.0
    %680 = vmatpush1.msra.mxu0 0.0
    %681 = vmatprep.subr.mxu0 0.0
    %682 = vmatpush1.msra.mxu0 0.0
    %683 = vmatprep.subr.mxu0 0.0
    %684 = vmatpush1.msra.mxu0 0.0
    %685 = vmatprep.subr.mxu0 0.0
    %686 = vmatpush1.msra.mxu0 0.0
    %687 = vmatprep.subr.mxu0 0.0
    %688 = vmatpush1.msra.mxu0 0.0
    %689 = vmatprep.subr.mxu0 0.0
    %690 = vmatpush1.msra.mxu0 0.0
    %691 = vmatprep.subr.mxu0 0.0
    %692 = vmatpush1.msra.mxu0 0.0
    %693 = vmatprep.subr.mxu0 0.0
    %694 = vmatpush1.msra.mxu0 0.0
    %695 = vmatprep.subr.mxu0 0.0
    %696 = vmatpush1.msra.mxu0 0.0
    %697 = vmatprep.subr.mxu0 0.0
    %698 = vmatpush1.msra.mxu0 0.0
    %699 = vmatprep.subr.mxu0 0.0
    %700 = vmatpush1.msra.mxu0 0.0
    %701 = vmatprep.mubr.f32.mxu0 0.0
    %702 = vmatmul.mubr.f32.gmra.mrb[0].mxu0 %v180
    %v703 = vpop.f32.mrb[0].mxu0
    %v704 = vadd.f32 %v635, %v703
    %v705 = vpop.f32.mrb[0].mxu0
    %706 = vdwg.mxu0
    %707 = vmatprep.subr.mxu0 0.0
    %708 = vmatpush1.msra.mxu0 %v614
    %709 = vmatprep.subr.mxu0 0.0
    %710 = vmatpush1.msra.mxu0 0.0
    %711 = vmatprep.subr.mxu0 0.0
    %712 = vmatpush1.msra.mxu0 0.0
    %713 = vmatprep.subr.mxu0 0.0
    %714 = vmatpush1.msra.mxu0 0.0
    %715 = vmatprep.subr.mxu0 0.0
    %716 = vmatpush1.msra.mxu0 0.0
    %717 = vmatprep.subr.mxu0 0.0
    %718 = vmatpush1.msra.mxu0 0.0
    %719 = vmatprep.subr.mxu0 0.0
    %720 = vmatpush1.msra.mxu0 0.0
    %721 = vmatprep.subr.mxu0 0.0
    %722 = vmatpush1.msra.mxu0 0.0
    %723 = vmatprep.subr.mxu0 0.0
    %724 = vmatpush1.msra.mxu0 0.0
    %725 = vmatprep.subr.mxu0 0.0
    %726 = vmatpush1.msra.mxu0 0.0
    %727 = vmatprep.subr.mxu0 0.0
    %728 = vmatpush1.msra.mxu0 0.0
    %729 = vmatprep.subr.mxu0 0.0
    %730 = vmatpush1.msra.mxu0 0.0
    %731 = vmatprep.subr.mxu0 0.0
    %732 = vmatpush1.msra.mxu0 0.0
    %733 = vmatprep.subr.mxu0 0.0
    %734 = vmatpush1.msra.mxu0 0.0
    %735 = vmatprep.subr.mxu0 0.0
    %736 = vmatpush1.msra.mxu0 0.0
    %737 = vmatprep.subr.mxu0 0.0
    %738 = vmatpush1.msra.mxu0 0.0
    %739 = vmatprep.subr.mxu0 0.0
    %740 = vmatpush1.msra.mxu0 0.0
    %741 = vmatprep.subr.mxu0 0.0
    %742 = vmatpush1.msra.mxu0 0.0
    %743 = vmatprep.subr.mxu0 0.0
    %744 = vmatpush1.msra.mxu0 0.0
    %745 = vmatprep.subr.mxu0 0.0
    %746 = vmatpush1.msra.mxu0 0.0
    %747 = vmatprep.subr.mxu0 0.0
    %748 = vmatpush1.msra.mxu0 0.0
    %749 = vmatprep.subr.mxu0 0.0
    %750 = vmatpush1.msra.mxu0 0.0
    %751 = vmatprep.subr.mxu0 0.0
    %752 = vmatpush1.msra.mxu0 0.0
    %753 = vmatprep.subr.mxu0 0.0
    %754 = vmatpush1.msra.mxu0 0.0
    %755 = vmatprep.subr.mxu0 0.0
    %756 = vmatpush1.msra.mxu0 0.0
    %757 = vmatprep.subr.mxu0 0.0
    %758 = vmatpush1.msra.mxu0 0.0
    %759 = vmatprep.subr.mxu0 0.0
    %760 = vmatpush1.msra.mxu0 0.0
    %761 = vmatprep.subr.mxu0 0.0
    %762 = vmatpush1.msra.mxu0 0.0
    %763 = vmatprep.subr.mxu0 0.0
    %764 = vmatpush1.msra.mxu0 0.0
    %765 = vmatprep.subr.mxu0 0.0
    %766 = vmatpush1.msra.mxu0 0.0
    %767 = vmatprep.subr.mxu0 0.0
    %768 = vmatpush1.msra.mxu0 0.0
    %769 = vmatprep.subr.mxu0 0.0
    %770 = vmatpush1.msra.mxu0 0.0
    %771 = vmatprep.mubr.f32.mxu0 0.0
    %772 = vmatmul.mubr.f32.gmra.mrb[0].mxu0 %v253
    %v773 = vpop.f32.mrb[0].mxu0
    %v774 = vadd.f32 %v636, %v773
    %v775 = vpop.f32.mrb[0].mxu0
    %776 = vdwg.mxu0
    %778 = vset.pattern.permute.xlu0 0
    %779 = vperm.xlu0 %778, %v630
    %v780 = vpop.permute.xlu0 %779
    %v782 = vmul.f32 %v780, %v704
    %v783 = vmul.f32 %v780, %v774
    %v784 = vld [vmem:[%s23] sm:$0xff]
    %v785 = vld [vmem:[%s23 + $0x8] sm:$0xff]
    %v786 = vld [vmem:[%s23 + $0x10] sm:$0xff]
    %v787 = vld [vmem:[%s23 + $0x18] sm:$0xff]
    %v789 = vsel %vm424, %v782, 0
    %v792 = vsel %vm424, %v783, 0
    %794 = vmatprep.subr.mxu0 0.0
    %795 = vmatpush1.msra.mxu0 %v784
    %796 = vmatprep.subr.mxu0 0.0
    %797 = vmatpush1.msra.mxu0 %v785
    %798 = vmatprep.subr.mxu0 0.0
    %799 = vmatpush1.msra.mxu0 %v786
    %800 = vmatprep.subr.mxu0 0.0
    %801 = vmatpush1.msra.mxu0 %v787
    %802 = vmatprep.subr.mxu0 0.0
    %803 = vmatpush1.msra.mxu0 0.0
    %804 = vmatprep.subr.mxu0 0.0
    %805 = vmatpush1.msra.mxu0 0.0
    %806 = vmatprep.subr.mxu0 0.0
    %807 = vmatpush1.msra.mxu0 0.0
    %808 = vmatprep.subr.mxu0 0.0
    %809 = vmatpush1.msra.mxu0 0.0
    %810 = vmatprep.subr.mxu0 0.0
    %811 = vmatpush1.msra.mxu0 0.0
    %812 = vmatprep.subr.mxu0 0.0
    %813 = vmatpush1.msra.mxu0 0.0
    %814 = vmatprep.subr.mxu0 0.0
    %815 = vmatpush1.msra.mxu0 0.0
    %816 = vmatprep.subr.mxu0 0.0
    %817 = vmatpush1.msra.mxu0 0.0
    %818 = vmatprep.subr.mxu0 0.0
    %819 = vmatpush1.msra.mxu0 0.0
    %820 = vmatprep.subr.mxu0 0.0
    %821 = vmatpush1.msra.mxu0 0.0
    %822 = vmatprep.subr.mxu0 0.0
    %823 = vmatpush1.msra.mxu0 0.0
    %824 = vmatprep.subr.mxu0 0.0
    %825 = vmatpush1.msra.mxu0 0.0
    %826 = vmatprep.subr.mxu0 0.0
    %827 = vmatpush1.msra.mxu0 0.0
    %828 = vmatprep.subr.mxu0 0.0
    %829 = vmatpush1.msra.mxu0 0.0
    %830 = vmatprep.subr.mxu0 0.0
    %831 = vmatpush1.msra.mxu0 0.0
    %832 = vmatprep.subr.mxu0 0.0
    %833 = vmatpush1.msra.mxu0 0.0
    %834 = vmatprep.subr.mxu0 0.0
    %835 = vmatpush1.msra.mxu0 0.0
    %836 = vmatprep.subr.mxu0 0.0
    %837 = vmatpush1.msra.mxu0 0.0
    %838 = vmatprep.subr.mxu0 0.0
    %839 = vmatpush1.msra.mxu0 0.0
    %840 = vmatprep.subr.mxu0 0.0
    %841 = vmatpush1.msra.mxu0 0.0
    %842 = vmatprep.subr.mxu0 0.0
    %843 = vmatpush1.msra.mxu0 0.0
    %844 = vmatprep.subr.mxu0 0.0
    %845 = vmatpush1.msra.mxu0 0.0
    %846 = vmatprep.subr.mxu0 0.0
    %847 = vmatpush1.msra.mxu0 0.0
    %848 = vmatprep.subr.mxu0 0.0
    %849 = vmatpush1.msra.mxu0 0.0
    %850 = vmatprep.subr.mxu0 0.0
    %851 = vmatpush1.msra.mxu0 0.0
    %852 = vmatprep.subr.mxu0 0.0
    %853 = vmatpush1.msra.mxu0 0.0
    %854 = vmatprep.subr.mxu0 0.0
    %855 = vmatpush1.msra.mxu0 0.0
    %856 = vmatprep.subr.mxu0 0.0
    %857 = vmatpush1.msra.mxu0 0.0
    %858 = vmatprep.mubr.f32.mxu0 0.0
    %859 = vmatmul.mubr.f32.gmra.mrb[0].mxu0 %v789
    %v860 = vpop.f32.mrb[0].mxu0
    %v861 = vadd.f32 0.0, %v860
    %v862 = vpop.f32.mrb[0].mxu0
    %863 = vmatprep.mubr.f32.mxu0 0.0
    %864 = vmatmul.mubr.f32.gmra.mrb[0].mxu0 %v792
    %v865 = vpop.f32.mrb[0].mxu0
    %v866 = vadd.f32 0.0, %v865
    %v867 = vpop.f32.mrb[0].mxu0
    %868 = vdwg.mxu0
    %v869 = vld [vmem:[%s25] sm:$0xff]
    %v870 = vadd.f32 %v861, %v869
    %v871 = vadd.f32 %v866, %v869
    %v872 = vmax.f32 %v870, 0.0
    %v873 = vmax.f32 %v871, 0.0
    %v874 = vld [vmem:[%s29] sm:$0xff]
    %v875 = vld [vmem:[%s29 + $0x8] sm:$0xff]
    %v876 = vld [vmem:[%s29 + $0x10] sm:$0xff]
    %v877 = vld [vmem:[%s29 + $0x18] sm:$0xff]
    %v879 = vsel %vm424, %v872, 0
    %v882 = vsel %vm424, %v873, 0
    %884 = vmatprep.subr.mxu0 0.0
    %885 = vmatpush1.msra.mxu0 %v874
    %886 = vmatprep.subr.mxu0 0.0
    %887 = vmatpush1.msra.mxu0 %v875
    %888 = vmatprep.subr.mxu0 0.0
    %889 = vmatpush1.msra.mxu0 %v876
    %890 = vmatprep.subr.mxu0 0.0
    %891 = vmatpush1.msra.mxu0 %v877
    %892 = vmatprep.subr.mxu0 0.0
    %893 = vmatpush1.msra.mxu0 0.0
    %894 = vmatprep.subr.mxu0 0.0
    %895 = vmatpush1.msra.mxu0 0.0
    %896 = vmatprep.subr.mxu0 0.0
    %897 = vmatpush1.msra.mxu0 0.0
    %898 = vmatprep.subr.mxu0 0.0
    %899 = vmatpush1.msra.mxu0 0.0
    %900 = vmatprep.subr.mxu0 0.0
    %901 = vmatpush1.msra.mxu0 0.0
    %902 = vmatprep.subr.mxu0 0.0
    %903 = vmatpush1.msra.mxu0 0.0
    %904 = vmatprep.subr.mxu0 0.0
    %905 = vmatpush1.msra.mxu0 0.0
    %906 = vmatprep.subr.mxu0 0.0
    %907 = vmatpush1.msra.mxu0 0.0
    %908 = vmatprep.subr.mxu0 0.0
    %909 = vmatpush1.msra.mxu0 0.0
    %910 = vmatprep.subr.mxu0 0.0
    %911 = vmatpush1.msra.mxu0 0.0
    %912 = vmatprep.subr.mxu0 0.0
    %913 = vmatpush1.msra.mxu0 0.0
    %914 = vmatprep.subr.mxu0 0.0
    %915 = vmatpush1.msra.mxu0 0.0
    %916 = vmatprep.subr.mxu0 0.0
    %917 = vmatpush1.msra.mxu0 0.0
    %918 = vmatprep.subr.mxu0 0.0
    %919 = vmatpush1.msra.mxu0 0.0
    %920 = vmatprep.subr.mxu0 0.0
    %921 = vmatpush1.msra.mxu0 0.0
    %922 = vmatprep.subr.mxu0 0.0
    %923 = vmatpush1.msra.mxu0 0.0
    %924 = vmatprep.subr.mxu0 0.0
    %925 = vmatpush1.msra.mxu0 0.0
    %926 = vmatprep.subr.mxu0 0.0
    %927 = vmatpush1.msra.mxu0 0.0
    %928 = vmatprep.subr.mxu0 0.0
    %929 = vmatpush1.msra.mxu0 0.0
    %930 = vmatprep.subr.mxu0 0.0
    %931 = vmatpush1.msra.mxu0 0.0
    %932 = vmatprep.subr.mxu0 0.0
    %933 = vmatpush1.msra.mxu0 0.0
    %934 = vmatprep.subr.mxu0 0.0
    %935 = vmatpush1.msra.mxu0 0.0
    %936 = vmatprep.subr.mxu0 0.0
    %937 = vmatpush1.msra.mxu0 0.0
    %938 = vmatprep.subr.mxu0 0.0
    %939 = vmatpush1.msra.mxu0 0.0
    %940 = vmatprep.subr.mxu0 0.0
    %941 = vmatpush1.msra.mxu0 0.0
    %942 = vmatprep.subr.mxu0 0.0
    %943 = vmatpush1.msra.mxu0 0.0
    %944 = vmatprep.subr.mxu0 0.0
    %945 = vmatpush1.msra.mxu0 0.0
    %946 = vmatprep.subr.mxu0 0.0
    %947 = vmatpush1.msra.mxu0 0.0
    %948 = vmatprep.mubr.f32.mxu0 0.0
    %949 = vmatmul.mubr.f32.gmra.mrb[0].mxu0 %v879
    %v950 = vpop.f32.mrb[0].mxu0
    %v951 = vadd.f32 0.0, %v950
    %v952 = vpop.f32.mrb[0].mxu0
    %953 = vmatprep.mubr.f32.mxu0 0.0
    %954 = vmatmul.mubr.f32.gmra.mrb[0].mxu0 %v882
    %v955 = vpop.f32.mrb[0].mxu0
    %v956 = vadd.f32 0.0, %v955
    %v957 = vpop.f32.mrb[0].mxu0
    %958 = vdwg.mxu0
    %v959 = vld [vmem:[%s33] sm:$0xff]
    %961 = vset.pattern.permute.xlu0 0
    %962 = vperm.xlu0 %961, %v959
    %v963 = vpop.permute.xlu0 %962
    %v965 = vmul.f32 %v963, %v951
    %v966 = vmul.f32 %v963, %v956
    %v967 = vld [vmem:[%s31] sm:$0xff]
    %v968 = vadd.f32 %v965, %v967
    %v969 = vadd.f32 %v966, %v967
    %v970 = vmax.f32 %v968, 0.0
    %v971 = vmax.f32 %v969, 0.0
    %v972 = vld [vmem:[%s35] sm:$0xff]
    %v973 = vld [vmem:[%s35 + $0x8] sm:$0xff]
    %v974 = vld [vmem:[%s35 + $0x10] sm:$0xff]
    %v975 = vld [vmem:[%s35 + $0x18] sm:$0xff]
    %v977 = vsel %vm424, %v970, 0
    %v980 = vsel %vm424, %v971, 0
    %982 = vmatprep.subr.mxu0 0.0
    %983 = vmatpush1.msra.mxu0 %v972
    %984 = vmatprep.subr.mxu0 0.0
    %985 = vmatpush1.msra.mxu0 %v973
    %986 = vmatprep.subr.mxu0 0.0
    %987 = vmatpush1.msra.mxu0 %v974
    %988 = vmatprep.subr.mxu0 0.0
    %989 = vmatpush1.msra.mxu0 %v975
    %990 = vmatprep.subr.mxu0 0.0
    %991 = vmatpush1.msra.mxu0 0.0
    %992 = vmatprep.subr.mxu0 0.0
    %993 = vmatpush1.msra.mxu0 0.0
    %994 = vmatprep.subr.mxu0 0.0
    %995 = vmatpush1.msra.mxu0 0.0
    %996 = vmatprep.subr.mxu0 0.0
    %997 = vmatpush1.msra.mxu0 0.0
    %998 = vmatprep.subr.mxu0 0.0
    %999 = vmatpush1.msra.mxu0 0.0
    %1000 = vmatprep.subr.mxu0 0.0
    %1001 = vmatpush1.msra.mxu0 0.0
    %1002 = vmatprep.subr.mxu0 0.0
    %1003 = vmatpush1.msra.mxu0 0.0
    %1004 = vmatprep.subr.mxu0 0.0
    %1005 = vmatpush1.msra.mxu0 0.0
    %1006 = vmatprep.subr.mxu0 0.0
    %1007 = vmatpush1.msra.mxu0 0.0
    %1008 = vmatprep.subr.mxu0 0.0
    %1009 = vmatpush1.msra.mxu0 0.0
    %1010 = vmatprep.subr.mxu0 0.0
    %1011 = vmatpush1.msra.mxu0 0.0
    %1012 = vmatprep.subr.mxu0 0.0
    %1013 = vmatpush1.msra.mxu0 0.0
    %1014 = vmatprep.subr.mxu0 0.0
    %1015 = vmatpush1.msra.mxu0 0.0
    %1016 = vmatprep.subr.mxu0 0.0
    %1017 = vmatpush1.msra.mxu0 0.0
    %1018 = vmatprep.subr.mxu0 0.0
    %1019 = vmatpush1.msra.mxu0 0.0
    %1020 = vmatprep.subr.mxu0 0.0
    %1021 = vmatpush1.msra.mxu0 0.0
    %1022 = vmatprep.subr.mxu0 0.0
    %1023 = vmatpush1.msra.mxu0 0.0
    %1024 = vmatprep.subr.mxu0 0.0
    %1025 = vmatpush1.msra.mxu0 0.0
    %1026 = vmatprep.subr.mxu0 0.0
    %1027 = vmatpush1.msra.mxu0 0.0
    %1028 = vmatprep.subr.mxu0 0.0
    %1029 = vmatpush1.msra.mxu0 0.0
    %1030 = vmatprep.subr.mxu0 0.0
    %1031 = vmatpush1.msra.mxu0 0.0
    %1032 = vmatprep.subr.mxu0 0.0
    %1033 = vmatpush1.msra.mxu0 0.0
    %1034 = vmatprep.subr.mxu0 0.0
    %1035 = vmatpush1.msra.mxu0 0.0
    %1036 = vmatprep.subr.mxu0 0.0
    %1037 = vmatpush1.msra.mxu0 0.0
    %1038 = vmatprep.subr.mxu0 0.0
    %1039 = vmatpush1.msra.mxu0 0.0
    %1040 = vmatprep.subr.mxu0 0.0
    %1041 = vmatpush1.msra.mxu0 0.0
    %1042 = vmatprep.subr.mxu0 0.0
    %1043 = vmatpush1.msra.mxu0 0.0
    %1044 = vmatprep.subr.mxu0 0.0
    %1045 = vmatpush1.msra.mxu0 0.0
    %1046 = vmatprep.mubr.f32.mxu0 0.0
    %1047 = vmatmul.mubr.f32.gmra.mrb[0].mxu0 %v977
    %v1048 = vpop.f32.mrb[0].mxu0
    %v1049 = vadd.f32 0.0, %v1048
    %v1050 = vpop.f32.mrb[0].mxu0
    %1051 = vmatprep.mubr.f32.mxu0 0.0
    %1052 = vmatmul.mubr.f32.gmra.mrb[0].mxu0 %v980
    %v1053 = vpop.f32.mrb[0].mxu0
    %v1054 = vadd.f32 0.0, %v1053
    %v1055 = vpop.f32.mrb[0].mxu0
    %1056 = vdwg.mxu0
    %v1057 = vld [vmem:[%s37] sm:$0x1]
    %v1059 = vlaneseq
    %v1060 = vshrl.u32 %v1059, 7
    %v1061 = vsub.s32 0, %v1060
    %v1062 = vrot.slane %v1057, %v1061
    %v1064 = vadd.f32 %v1049, %v1062
    %v1065 = vadd.f32 %v1054, %v1062
    %v1066 = vmax.f32 %v1064, 0.0
    %v1067 = vmax.f32 %v1065, 0.0
    %v1068 = vsel %vm424, %v1066, 0.0
    %v1069 = vrot.slane %v1068, 4
    %v1070 = vadd.f32 %v1068, %v1069
    %v1071 = vrot.slane %v1070, 2
    %v1072 = vadd.f32 %v1070, %v1071
    %v1073 = vrot.slane %v1072, 1
    %v1074 = vadd.f32 %v1072, %v1073
    %v1075 = vsel %vm424, %v1067, 0.0
    %v1076 = vrot.slane %v1075, 4
    %v1077 = vadd.f32 %v1075, %v1076
    %v1078 = vrot.slane %v1077, 2
    %v1079 = vadd.f32 %v1077, %v1078
    %v1080 = vrot.slane %v1079, 1
    %v1081 = vadd.f32 %v1079, %v1080
    %s1082 = sld [smem:[#allocation2 + $0x2]]
    %v1083 = vld [vmem:[%s43] sm:$0xff]
    %s1084 = ssub.f32 %s1082, 1.0
    %v1085 = vmul.f32 %v150, %v1066
    %v1086 = vmul.f32 %v153, %v1067
    %v1087 = vstv %s1084
    %v1088 = vmul.f32 %v1087, %v1085
    %v1089 = vmul.f32 %v1087, %v1086
    %1090 = vmatprep.subr.mxu0 0.0
    %1091 = vmatpush1.msra.mxu0 %v1066
    %1092 = vmatprep.subr.mxu0 0.0
    %1093 = vmatpush1.msra.mxu0 0.0
    %1094 = vmatprep.subr.mxu0 0.0
    %1095 = vmatpush1.msra.mxu0 0.0
    %1096 = vmatprep.subr.mxu0 0.0
    %1097 = vmatpush1.msra.mxu0 0.0
    %1098 = vmatprep.subr.mxu0 0.0
    %1099 = vmatpush1.msra.mxu0 0.0
    %1100 = vmatprep.subr.mxu0 0.0
    %1101 = vmatpush1.msra.mxu0 0.0
    %1102 = vmatprep.subr.mxu0 0.0
    %1103 = vmatpush1.msra.mxu0 0.0
    %1104 = vmatprep.subr.mxu0 0.0
    %1105 = vmatpush1.msra.mxu0 0.0
    %1106 = vmatprep.subr.mxu0 0.0
    %1107 = vmatpush1.msra.mxu0 0.0
    %1108 = vmatprep.subr.mxu0 0.0
    %1109 = vmatpush1.msra.mxu0 0.0
    %1110 = vmatprep.subr.mxu0 0.0
    %1111 = vmatpush1.msra.mxu0 0.0
    %1112 = vmatprep.subr.mxu0 0.0
    %1113 = vmatpush1.msra.mxu0 0.0
    %1114 = vmatprep.subr.mxu0 0.0
    %1115 = vmatpush1.msra.mxu0 0.0
    %1116 = vmatprep.subr.mxu0 0.0
    %1117 = vmatpush1.msra.mxu0 0.0
    %1118 = vmatprep.subr.mxu0 0.0
    %1119 = vmatpush1.msra.mxu0 0.0
    %1120 = vmatprep.subr.mxu0 0.0
    %1121 = vmatpush1.msra.mxu0 0.0
    %1122 = vmatprep.subr.mxu0 0.0
    %1123 = vmatpush1.msra.mxu0 0.0
    %1124 = vmatprep.subr.mxu0 0.0
    %1125 = vmatpush1.msra.mxu0 0.0
    %1126 = vmatprep.subr.mxu0 0.0
    %1127 = vmatpush1.msra.mxu0 0.0
    %1128 = vmatprep.subr.mxu0 0.0
    %1129 = vmatpush1.msra.mxu0 0.0
    %1130 = vmatprep.subr.mxu0 0.0
    %1131 = vmatpush1.msra.mxu0 0.0
    %1132 = vmatprep.subr.mxu0 0.0
    %1133 = vmatpush1.msra.mxu0 0.0
    %1134 = vmatprep.subr.mxu0 0.0
    %1135 = vmatpush1.msra.mxu0 0.0
    %1136 = vmatprep.subr.mxu0 0.0
    %1137 = vmatpush1.msra.mxu0 0.0
    %1138 = vmatprep.subr.mxu0 0.0
    %1139 = vmatpush1.msra.mxu0 0.0
    %1140 = vmatprep.subr.mxu0 0.0
    %1141 = vmatpush1.msra.mxu0 0.0
    %1142 = vmatprep.subr.mxu0 0.0
    %1143 = vmatpush1.msra.mxu0 0.0
    %1144 = vmatprep.subr.mxu0 0.0
    %1145 = vmatpush1.msra.mxu0 0.0
    %1146 = vmatprep.subr.mxu0 0.0
    %1147 = vmatpush1.msra.mxu0 0.0
    %1148 = vmatprep.subr.mxu0 0.0
    %1149 = vmatpush1.msra.mxu0 0.0
    %1150 = vmatprep.subr.mxu0 0.0
    %1151 = vmatpush1.msra.mxu0 0.0
    %1152 = vmatprep.subr.mxu0 0.0
    %1153 = vmatpush1.msra.mxu0 0.0
    %1154 = vmatprep.mubr.f32.mxu0 0.0
    %1155 = vmatmul.mubr.f32.gmra.mrb[0].mxu0 %v180
    %v1156 = vpop.f32.mrb[0].mxu0
    %v1157 = vadd.f32 %v1088, %v1156
    %v1158 = vpop.f32.mrb[0].mxu0
    %1159 = vdwg.mxu0
    %1160 = vmatprep.subr.mxu0 0.0
    %1161 = vmatpush1.msra.mxu0 %v1067
    %1162 = vmatprep.subr.mxu0 0.0
    %1163 = vmatpush1.msra.mxu0 0.0
    %1164 = vmatprep.subr.mxu0 0.0
    %1165 = vmatpush1.msra.mxu0 0.0
    %1166 = vmatprep.subr.mxu0 0.0
    %1167 = vmatpush1.msra.mxu0 0.0
    %1168 = vmatprep.subr.mxu0 0.0
    %1169 = vmatpush1.msra.mxu0 0.0
    %1170 = vmatprep.subr.mxu0 0.0
    %1171 = vmatpush1.msra.mxu0 0.0
    %1172 = vmatprep.subr.mxu0 0.0
    %1173 = vmatpush1.msra.mxu0 0.0
    %1174 = vmatprep.subr.mxu0 0.0
    %1175 = vmatpush1.msra.mxu0 0.0
    %1176 = vmatprep.subr.mxu0 0.0
    %1177 = vmatpush1.msra.mxu0 0.0
    %1178 = vmatprep.subr.mxu0 0.0
    %1179 = vmatpush1.msra.mxu0 0.0
    %1180 = vmatprep.subr.mxu0 0.0
    %1181 = vmatpush1.msra.mxu0 0.0
    %1182 = vmatprep.subr.mxu0 0.0
    %1183 = vmatpush1.msra.mxu0 0.0
    %1184 = vmatprep.subr.mxu0 0.0
    %1185 = vmatpush1.msra.mxu0 0.0
    %1186 = vmatprep.subr.mxu0 0.0
    %1187 = vmatpush1.msra.mxu0 0.0
    %1188 = vmatprep.subr.mxu0 0.0
    %1189 = vmatpush1.msra.mxu0 0.0
    %1190 = vmatprep.subr.mxu0 0.0
    %1191 = vmatpush1.msra.mxu0 0.0
    %1192 = vmatprep.subr.mxu0 0.0
    %1193 = vmatpush1.msra.mxu0 0.0
    %1194 = vmatprep.subr.mxu0 0.0
    %1195 = vmatpush1.msra.mxu0 0.0
    %1196 = vmatprep.subr.mxu0 0.0
    %1197 = vmatpush1.msra.mxu0 0.0
    %1198 = vmatprep.subr.mxu0 0.0
    %1199 = vmatpush1.msra.mxu0 0.0
    %1200 = vmatprep.subr.mxu0 0.0
    %1201 = vmatpush1.msra.mxu0 0.0
    %1202 = vmatprep.subr.mxu0 0.0
    %1203 = vmatpush1.msra.mxu0 0.0
    %1204 = vmatprep.subr.mxu0 0.0
    %1205 = vmatpush1.msra.mxu0 0.0
    %1206 = vmatprep.subr.mxu0 0.0
    %1207 = vmatpush1.msra.mxu0 0.0
    %1208 = vmatprep.subr.mxu0 0.0
    %1209 = vmatpush1.msra.mxu0 0.0
    %1210 = vmatprep.subr.mxu0 0.0
    %1211 = vmatpush1.msra.mxu0 0.0
    %1212 = vmatprep.subr.mxu0 0.0
    %1213 = vmatpush1.msra.mxu0 0.0
    %1214 = vmatprep.subr.mxu0 0.0
    %1215 = vmatpush1.msra.mxu0 0.0
    %1216 = vmatprep.subr.mxu0 0.0
    %1217 = vmatpush1.msra.mxu0 0.0
    %1218 = vmatprep.subr.mxu0 0.0
    %1219 = vmatpush1.msra.mxu0 0.0
    %1220 = vmatprep.subr.mxu0 0.0
    %1221 = vmatpush1.msra.mxu0 0.0
    %1222 = vmatprep.subr.mxu0 0.0
    %1223 = vmatpush1.msra.mxu0 0.0
    %1224 = vmatprep.mubr.f32.mxu0 0.0
    %1225 = vmatmul.mubr.f32.gmra.mrb[0].mxu0 %v253
    %v1226 = vpop.f32.mrb[0].mxu0
    %v1227 = vadd.f32 %v1089, %v1226
    %v1228 = vpop.f32.mrb[0].mxu0
    %1229 = vdwg.mxu0
    %1231 = vset.pattern.permute.xlu0 0
    %1232 = vperm.xlu0 %1231, %v1083
    %v1233 = vpop.permute.xlu0 %1232
    %v1235 = vmul.f32 %v1233, %v1157
    %v1236 = vmul.f32 %v1233, %v1227
    %v1237 = vld [vmem:[%s39] sm:$0xff]
    %v1238 = vld [vmem:[%s39 + $0x8] sm:$0xff]
    %v1239 = vld [vmem:[%s39 + $0x10] sm:$0xff]
    %v1240 = vld [vmem:[%s39 + $0x18] sm:$0xff]
    %v1242 = vsel %vm424, %v1235, 0
    %v1245 = vsel %vm424, %v1236, 0
    %1247 = vmatprep.subr.mxu0 0.0
    %1248 = vmatpush1.msra.mxu0 %v1237
    %1249 = vmatprep.subr.mxu0 0.0
    %1250 = vmatpush1.msra.mxu0 %v1238
    %1251 = vmatprep.subr.mxu0 0.0
    %1252 = vmatpush1.msra.mxu0 %v1239
    %1253 = vmatprep.subr.mxu0 0.0
    %1254 = vmatpush1.msra.mxu0 %v1240
    %1255 = vmatprep.subr.mxu0 0.0
    %1256 = vmatpush1.msra.mxu0 0.0
    %1257 = vmatprep.subr.mxu0 0.0
    %1258 = vmatpush1.msra.mxu0 0.0
    %1259 = vmatprep.subr.mxu0 0.0
    %1260 = vmatpush1.msra.mxu0 0.0
    %1261 = vmatprep.subr.mxu0 0.0
    %1262 = vmatpush1.msra.mxu0 0.0
    %1263 = vmatprep.subr.mxu0 0.0
    %1264 = vmatpush1.msra.mxu0 0.0
    %1265 = vmatprep.subr.mxu0 0.0
    %1266 = vmatpush1.msra.mxu0 0.0
    %1267 = vmatprep.subr.mxu0 0.0
    %1268 = vmatpush1.msra.mxu0 0.0
    %1269 = vmatprep.subr.mxu0 0.0
    %1270 = vmatpush1.msra.mxu0 0.0
    %1271 = vmatprep.subr.mxu0 0.0
    %1272 = vmatpush1.msra.mxu0 0.0
    %1273 = vmatprep.subr.mxu0 0.0
    %1274 = vmatpush1.msra.mxu0 0.0
    %1275 = vmatprep.subr.mxu0 0.0
    %1276 = vmatpush1.msra.mxu0 0.0
    %1277 = vmatprep.subr.mxu0 0.0
    %1278 = vmatpush1.msra.mxu0 0.0
    %1279 = vmatprep.subr.mxu0 0.0
    %1280 = vmatpush1.msra.mxu0 0.0
    %1281 = vmatprep.subr.mxu0 0.0
    %1282 = vmatpush1.msra.mxu0 0.0
    %1283 = vmatprep.subr.mxu0 0.0
    %1284 = vmatpush1.msra.mxu0 0.0
    %1285 = vmatprep.subr.mxu0 0.0
    %1286 = vmatpush1.msra.mxu0 0.0
    %1287 = vmatprep.subr.mxu0 0.0
    %1288 = vmatpush1.msra.mxu0 0.0
    %1289 = vmatprep.subr.mxu0 0.0
    %1290 = vmatpush1.msra.mxu0 0.0
    %1291 = vmatprep.subr.mxu0 0.0
    %1292 = vmatpush1.msra.mxu0 0.0
    %1293 = vmatprep.subr.mxu0 0.0
    %1294 = vmatpush1.msra.mxu0 0.0
    %1295 = vmatprep.subr.mxu0 0.0
    %1296 = vmatpush1.msra.mxu0 0.0
    %1297 = vmatprep.subr.mxu0 0.0
    %1298 = vmatpush1.msra.mxu0 0.0
    %1299 = vmatprep.subr.mxu0 0.0
    %1300 = vmatpush1.msra.mxu0 0.0
    %1301 = vmatprep.subr.mxu0 0.0
    %1302 = vmatpush1.msra.mxu0 0.0
    %1303 = vmatprep.subr.mxu0 0.0
    %1304 = vmatpush1.msra.mxu0 0.0
    %1305 = vmatprep.subr.mxu0 0.0
    %1306 = vmatpush1.msra.mxu0 0.0
    %1307 = vmatprep.subr.mxu0 0.0
    %1308 = vmatpush1.msra.mxu0 0.0
    %1309 = vmatprep.subr.mxu0 0.0
    %1310 = vmatpush1.msra.mxu0 0.0
    %1311 = vmatprep.mubr.f32.mxu0 0.0
    %1312 = vmatmul.mubr.f32.gmra.mrb[0].mxu0 %v1242
    %v1313 = vpop.f32.mrb[0].mxu0
    %v1314 = vadd.f32 0.0, %v1313
    %v1315 = vpop.f32.mrb[0].mxu0
    %1316 = vmatprep.mubr.f32.mxu0 0.0
    %1317 = vmatmul.mubr.f32.gmra.mrb[0].mxu0 %v1245
    %v1318 = vpop.f32.mrb[0].mxu0
    %v1319 = vadd.f32 0.0, %v1318
    %v1320 = vpop.f32.mrb[0].mxu0
    %1321 = vdwg.mxu0
    %v1322 = vld [vmem:[%s41] sm:$0xff]
    %v1323 = vadd.f32 %v1314, %v1322
    %v1324 = vadd.f32 %v1319, %v1322
    %v1325 = vmax.f32 %v1323, 0.0
    %v1326 = vmax.f32 %v1324, 0.0
    %v1327 = vld [vmem:[%s45] sm:$0xff]
    %v1328 = vld [vmem:[%s45 + $0x8] sm:$0xff]
    %v1329 = vld [vmem:[%s45 + $0x10] sm:$0xff]
    %v1330 = vld [vmem:[%s45 + $0x18] sm:$0xff]
    %v1332 = vsel %vm424, %v1325, 0
    %v1335 = vsel %vm424, %v1326, 0
    %1337 = vmatprep.subr.mxu0 0.0
    %1338 = vmatpush1.msra.mxu0 %v1327
    %1339 = vmatprep.subr.mxu0 0.0
    %1340 = vmatpush1.msra.mxu0 %v1328
    %1341 = vmatprep.subr.mxu0 0.0
    %1342 = vmatpush1.msra.mxu0 %v1329
    %1343 = vmatprep.subr.mxu0 0.0
    %1344 = vmatpush1.msra.mxu0 %v1330
    %1345 = vmatprep.subr.mxu0 0.0
    %1346 = vmatpush1.msra.mxu0 0.0
    %1347 = vmatprep.subr.mxu0 0.0
    %1348 = vmatpush1.msra.mxu0 0.0
    %1349 = vmatprep.subr.mxu0 0.0
    %1350 = vmatpush1.msra.mxu0 0.0
    %1351 = vmatprep.subr.mxu0 0.0
    %1352 = vmatpush1.msra.mxu0 0.0
    %1353 = vmatprep.subr.mxu0 0.0
    %1354 = vmatpush1.msra.mxu0 0.0
    %1355 = vmatprep.subr.mxu0 0.0
    %1356 = vmatpush1.msra.mxu0 0.0
    %1357 = vmatprep.subr.mxu0 0.0
    %1358 = vmatpush1.msra.mxu0 0.0
    %1359 = vmatprep.subr.mxu0 0.0
    %1360 = vmatpush1.msra.mxu0 0.0
    %1361 = vmatprep.subr.mxu0 0.0
    %1362 = vmatpush1.msra.mxu0 0.0
    %1363 = vmatprep.subr.mxu0 0.0
    %1364 = vmatpush1.msra.mxu0 0.0
    %1365 = vmatprep.subr.mxu0 0.0
    %1366 = vmatpush1.msra.mxu0 0.0
    %1367 = vmatprep.subr.mxu0 0.0
    %1368 = vmatpush1.msra.mxu0 0.0
    %1369 = vmatprep.subr.mxu0 0.0
    %1370 = vmatpush1.msra.mxu0 0.0
    %1371 = vmatprep.subr.mxu0 0.0
    %1372 = vmatpush1.msra.mxu0 0.0
    %1373 = vmatprep.subr.mxu0 0.0
    %1374 = vmatpush1.msra.mxu0 0.0
    %1375 = vmatprep.subr.mxu0 0.0
    %1376 = vmatpush1.msra.mxu0 0.0
    %1377 = vmatprep.subr.mxu0 0.0
    %1378 = vmatpush1.msra.mxu0 0.0
    %1379 = vmatprep.subr.mxu0 0.0
    %1380 = vmatpush1.msra.mxu0 0.0
    %1381 = vmatprep.subr.mxu0 0.0
    %1382 = vmatpush1.msra.mxu0 0.0
    %1383 = vmatprep.subr.mxu0 0.0
    %1384 = vmatpush1.msra.mxu0 0.0
    %1385 = vmatprep.subr.mxu0 0.0
    %1386 = vmatpush1.msra.mxu0 0.0
    %1387 = vmatprep.subr.mxu0 0.0
    %1388 = vmatpush1.msra.mxu0 0.0
    %1389 = vmatprep.subr.mxu0 0.0
    %1390 = vmatpush1.msra.mxu0 0.0
    %1391 = vmatprep.subr.mxu0 0.0
    %1392 = vmatpush1.msra.mxu0 0.0
    %1393 = vmatprep.subr.mxu0 0.0
    %1394 = vmatpush1.msra.mxu0 0.0
    %1395 = vmatprep.subr.mxu0 0.0
    %1396 = vmatpush1.msra.mxu0 0.0
    %1397 = vmatprep.subr.mxu0 0.0
    %1398 = vmatpush1.msra.mxu0 0.0
    %1399 = vmatprep.subr.mxu0 0.0
    %1400 = vmatpush1.msra.mxu0 0.0
    %1401 = vmatprep.mubr.f32.mxu0 0.0
    %1402 = vmatmul.mubr.f32.gmra.mrb[0].mxu0 %v1332
    %v1403 = vpop.f32.mrb[0].mxu0
    %v1404 = vadd.f32 0.0, %v1403
    %v1405 = vpop.f32.mrb[0].mxu0
    %1406 = vmatprep.mubr.f32.mxu0 0.0
    %1407 = vmatmul.mubr.f32.gmra.mrb[0].mxu0 %v1335
    %v1408 = vpop.f32.mrb[0].mxu0
    %v1409 = vadd.f32 0.0, %v1408
    %v1410 = vpop.f32.mrb[0].mxu0
    %1411 = vdwg.mxu0
    %v1412 = vld [vmem:[%s49] sm:$0xff]
    %1414 = vset.pattern.permute.xlu0 0
    %1415 = vperm.xlu0 %1414, %v1412
    %v1416 = vpop.permute.xlu0 %1415
    %v1418 = vmul.f32 %v1416, %v1404
    %v1419 = vmul.f32 %v1416, %v1409
    %v1420 = vld [vmem:[%s47] sm:$0xff]
    %v1421 = vadd.f32 %v1418, %v1420
    %v1422 = vadd.f32 %v1419, %v1420
    %v1423 = vmax.f32 %v1421, 0.0
    %v1424 = vmax.f32 %v1422, 0.0
    %v1425 = vld [vmem:[%s51] sm:$0xff]
    %v1426 = vld [vmem:[%s51 + $0x8] sm:$0xff]
    %v1427 = vld [vmem:[%s51 + $0x10] sm:$0xff]
    %v1428 = vld [vmem:[%s51 + $0x18] sm:$0xff]
    %v1430 = vsel %vm424, %v1423, 0
    %v1433 = vsel %vm424, %v1424, 0
    %1435 = vmatprep.subr.mxu0 0.0
    %1436 = vmatpush1.msra.mxu0 %v1425
    %1437 = vmatprep.subr.mxu0 0.0
    %1438 = vmatpush1.msra.mxu0 %v1426
    %1439 = vmatprep.subr.mxu0 0.0
    %1440 = vmatpush1.msra.mxu0 %v1427
    %1441 = vmatprep.subr.mxu0 0.0
    %1442 = vmatpush1.msra.mxu0 %v1428
    %1443 = vmatprep.subr.mxu0 0.0
    %1444 = vmatpush1.msra.mxu0 0.0
    %1445 = vmatprep.subr.mxu0 0.0
    %1446 = vmatpush1.msra.mxu0 0.0
    %1447 = vmatprep.subr.mxu0 0.0
    %1448 = vmatpush1.msra.mxu0 0.0
    %1449 = vmatprep.subr.mxu0 0.0
    %1450 = vmatpush1.msra.mxu0 0.0
    %1451 = vmatprep.subr.mxu0 0.0
    %1452 = vmatpush1.msra.mxu0 0.0
    %1453 = vmatprep.subr.mxu0 0.0
    %1454 = vmatpush1.msra.mxu0 0.0
    %1455 = vmatprep.subr.mxu0 0.0
    %1456 = vmatpush1.msra.mxu0 0.0
    %1457 = vmatprep.subr.mxu0 0.0
    %1458 = vmatpush1.msra.mxu0 0.0
    %1459 = vmatprep.subr.mxu0 0.0
    %1460 = vmatpush1.msra.mxu0 0.0
    %1461 = vmatprep.subr.mxu0 0.0
    %1462 = vmatpush1.msra.mxu0 0.0
    %1463 = vmatprep.subr.mxu0 0.0
    %1464 = vmatpush1.msra.mxu0 0.0
    %1465 = vmatprep.subr.mxu0 0.0
    %1466 = vmatpush1.msra.mxu0 0.0
    %1467 = vmatprep.subr.mxu0 0.0
    %1468 = vmatpush1.msra.mxu0 0.0
    %1469 = vmatprep.subr.mxu0 0.0
    %1470 = vmatpush1.msra.mxu0 0.0
    %1471 = vmatprep.subr.mxu0 0.0
    %1472 = vmatpush1.msra.mxu0 0.0
    %1473 = vmatprep.subr.mxu0 0.0
    %1474 = vmatpush1.msra.mxu0 0.0
    %1475 = vmatprep.subr.mxu0 0.0
    %1476 = vmatpush1.msra.mxu0 0.0
    %1477 = vmatprep.subr.mxu0 0.0
    %1478 = vmatpush1.msra.mxu0 0.0
    %1479 = vmatprep.subr.mxu0 0.0
    %1480 = vmatpush1.msra.mxu0 0.0
    %1481 = vmatprep.subr.mxu0 0.0
    %1482 = vmatpush1.msra.mxu0 0.0
    %1483 = vmatprep.subr.mxu0 0.0
    %1484 = vmatpush1.msra.mxu0 0.0
    %1485 = vmatprep.subr.mxu0 0.0
    %1486 = vmatpush1.msra.mxu0 0.0
    %1487 = vmatprep.subr.mxu0 0.0
    %1488 = vmatpush1.msra.mxu0 0.0
    %1489 = vmatprep.subr.mxu0 0.0
    %1490 = vmatpush1.msra.mxu0 0.0
    %1491 = vmatprep.subr.mxu0 0.0
    %1492 = vmatpush1.msra.mxu0 0.0
    %1493 = vmatprep.subr.mxu0 0.0
    %1494 = vmatpush1.msra.mxu0 0.0
    %1495 = vmatprep.subr.mxu0 0.0
    %1496 = vmatpush1.msra.mxu0 0.0
    %1497 = vmatprep.subr.mxu0 0.0
    %1498 = vmatpush1.msra.mxu0 0.0
    %1499 = vmatprep.mubr.f32.mxu0 0.0
    %1500 = vmatmul.mubr.f32.gmra.mrb[0].mxu0 %v1430
    %v1501 = vpop.f32.mrb[0].mxu0
    %v1502 = vadd.f32 0.0, %v1501
    %v1503 = vpop.f32.mrb[0].mxu0
    %1504 = vmatprep.mubr.f32.mxu0 0.0
    %1505 = vmatmul.mubr.f32.gmra.mrb[0].mxu0 %v1433
    %v1506 = vpop.f32.mrb[0].mxu0
    %v1507 = vadd.f32 0.0, %v1506
    %v1508 = vpop.f32.mrb[0].mxu0
    %1509 = vdwg.mxu0
    %v1510 = vld [vmem:[%s53] sm:$0x1]
    %v1512 = vlaneseq
    %v1513 = vshrl.u32 %v1512, 7
    %v1514 = vsub.s32 0, %v1513
    %v1515 = vrot.slane %v1510, %v1514
    %v1517 = vadd.f32 %v1502, %v1515
    %v1518 = vadd.f32 %v1507, %v1515
    %v1519 = vmax.f32 %v1517, 0.0
    %v1520 = vmax.f32 %v1518, 0.0
    %v1521 = vsel %vm424, %v1519, 0.0
    %v1522 = vrot.slane %v1521, 4
    %v1523 = vadd.f32 %v1521, %v1522
    %v1524 = vrot.slane %v1523, 2
    %v1525 = vadd.f32 %v1523, %v1524
    %v1526 = vrot.slane %v1525, 1
    %v1527 = vadd.f32 %v1525, %v1526
    %v1528 = vsel %vm424, %v1520, 0.0
    %v1529 = vrot.slane %v1528, 4
    %v1530 = vadd.f32 %v1528, %v1529
    %v1531 = vrot.slane %v1530, 2
    %v1532 = vadd.f32 %v1530, %v1531
    %v1533 = vrot.slane %v1532, 1
    %v1534 = vadd.f32 %v1532, %v1533
    %vm1537 = vcmask 1041409
    %v1538 = vsel %vm1537, %v170, %v163
    %v1542 = vsel %vm1537, %v628, %v621
    %1543 = vrot.lane.b32.xlu0 %v1542, 16
    %v1544 = vpop.permute.xlu0 %1543
    %v1548 = vsel %vm1537, %v1081, %v1074
    %1549 = vrot.lane.b32.xlu0 %v1548, 48
    %v1550 = vpop.permute.xlu0 %1549
    %v1554 = vsel %vm1537, %v1534, %v1527
    %1555 = vrot.lane.b32.xlu0 %v1554, 80
    %v1556 = vpop.permute.xlu0 %1555
    %v1558 = vsel %vm156, %v1538, %v1544
    %vm1559 = vcmask 392192
    %v1560 = vsel %vm1559, %v1558, %v1550
    %vm1561 = vcmask 654336
    %v1562 = vsel %vm1561, %v1560, %v1556
    %v1563 = vld [vmem:[%s55] sm:$0xff]
    %v1564 = vld [vmem:[%s55 + $0x8] sm:$0xff]
    %v1565 = vld [vmem:[%s55 + $0x10] sm:$0xff]
    %v1566 = vld [vmem:[%s55 + $0x18] sm:$0xff]
    %v1567 = vld [vmem:[%s55 + $0x20] sm:$0xff]
    %v1568 = vld [vmem:[%s55 + $0x28] sm:$0xff]
    %v1569 = vld [vmem:[%s55 + $0x30] sm:$0xff]
    %v1570 = vld [vmem:[%s55 + $0x38] sm:$0xff]
    %v1571 = vld [vmem:[%s55 + $0x40] sm:$0xff]
    %v1572 = vld [vmem:[%s55 + $0x48] sm:$0xff]
    %v1573 = vld [vmem:[%s55 + $0x50] sm:$0xff]
    %v1574 = vld [vmem:[%s55 + $0x58] sm:$0xff]
    %v1575 = vld [vmem:[%s55 + $0x60] sm:$0xff]
    %v1576 = vld [vmem:[%s55 + $0x68] sm:$0xff]
    %v1577 = vld [vmem:[%s57] sm:$0x1]
    %v1579 = vlaneseq
    %v1580 = vshrl.u32 %v1579, 7
    %v1581 = vsub.s32 0, %v1580
    %v1582 = vrot.slane %v1577, %v1581
    %vm1584 = vcmask 916480
    %v1586 = vsel %vm1584, %v1562, 0
    %1588 = vmatprep.subr.mxu0 0.0
    %1589 = vmatpush1.msra.mxu0 %v1563
    %1590 = vmatprep.subr.mxu0 0.0
    %1591 = vmatpush1.msra.mxu0 %v1564
    %1592 = vmatprep.subr.mxu0 0.0
    %1593 = vmatpush1.msra.mxu0 %v1565
    %1594 = vmatprep.subr.mxu0 0.0
    %1595 = vmatpush1.msra.mxu0 %v1566
    %1596 = vmatprep.subr.mxu0 0.0
    %1597 = vmatpush1.msra.mxu0 %v1567
    %1598 = vmatprep.subr.mxu0 0.0
    %1599 = vmatpush1.msra.mxu0 %v1568
    %1600 = vmatprep.subr.mxu0 0.0
    %1601 = vmatpush1.msra.mxu0 %v1569
    %1602 = vmatprep.subr.mxu0 0.0
    %1603 = vmatpush1.msra.mxu0 %v1570
    %1604 = vmatprep.subr.mxu0 0.0
    %1605 = vmatpush1.msra.mxu0 %v1571
    %1606 = vmatprep.subr.mxu0 0.0
    %1607 = vmatpush1.msra.mxu0 %v1572
    %1608 = vmatprep.subr.mxu0 0.0
    %1609 = vmatpush1.msra.mxu0 %v1573
    %1610 = vmatprep.subr.mxu0 0.0
    %1611 = vmatpush1.msra.mxu0 %v1574
    %1612 = vmatprep.subr.mxu0 0.0
    %1613 = vmatpush1.msra.mxu0 %v1575
    %1614 = vmatprep.subr.mxu0 0.0
    %1615 = vmatpush1.msra.mxu0 %v1576
    %1616 = vmatprep.subr.mxu0 0.0
    %1617 = vmatpush1.msra.mxu0 0.0
    %1618 = vmatprep.subr.mxu0 0.0
    %1619 = vmatpush1.msra.mxu0 0.0
    %1620 = vmatprep.subr.mxu0 0.0
    %1621 = vmatpush1.msra.mxu0 0.0
    %1622 = vmatprep.subr.mxu0 0.0
    %1623 = vmatpush1.msra.mxu0 0.0
    %1624 = vmatprep.subr.mxu0 0.0
    %1625 = vmatpush1.msra.mxu0 0.0
    %1626 = vmatprep.subr.mxu0 0.0
    %1627 = vmatpush1.msra.mxu0 0.0
    %1628 = vmatprep.subr.mxu0 0.0
    %1629 = vmatpush1.msra.mxu0 0.0
    %1630 = vmatprep.subr.mxu0 0.0
    %1631 = vmatpush1.msra.mxu0 0.0
    %1632 = vmatprep.subr.mxu0 0.0
    %1633 = vmatpush1.msra.mxu0 0.0
    %1634 = vmatprep.subr.mxu0 0.0
    %1635 = vmatpush1.msra.mxu0 0.0
    %1636 = vmatprep.subr.mxu0 0.0
    %1637 = vmatpush1.msra.mxu0 0.0
    %1638 = vmatprep.subr.mxu0 0.0
    %1639 = vmatpush1.msra.mxu0 0.0
    %1640 = vmatprep.subr.mxu0 0.0
    %1641 = vmatpush1.msra.mxu0 0.0
    %1642 = vmatprep.subr.mxu0 0.0
    %1643 = vmatpush1.msra.mxu0 0.0
    %1644 = vmatprep.subr.mxu0 0.0
    %1645 = vmatpush1.msra.mxu0 0.0
    %1646 = vmatprep.subr.mxu0 0.0
    %1647 = vmatpush1.msra.mxu0 0.0
    %1648 = vmatprep.subr.mxu0 0.0
    %1649 = vmatpush1.msra.mxu0 0.0
    %1650 = vmatprep.subr.mxu0 0.0
    %1651 = vmatpush1.msra.mxu0 0.0
    %1652 = vmatprep.mubr.f32.mxu0 0.0
    %1653 = vmatmul.mubr.f32.gmra.mrb[0].mxu0 %v1586
    %v1654 = vpop.f32.mrb[0].mxu0
    %v1655 = vadd.f32 %v1582, %v1654
    %v1656 = vpop.f32.mrb[0].mxu0
    %1657 = vdwg.mxu0
    %1658 = vst [vmem:[#allocation5] sm:$0x3] %v1655
    // Predicated region
    $region122: #{gnn_forward.1} parent=1 // pred_check
      _
    $region123: #{gnn_forward.1} parent=1 // pred_check_branch
      %1660 = sbr.rel (0) target = $region125
    $region124: #{gnn_forward.1} parent=1 // pred_region
      %s1662 = ssub.s32 32, 32
      %1663 = vsyncadd [#allocation3], %s1662
      %s1665 = sshll.u32 [#allocation5], 4
      %s1666 = int_to_ptr.vmem [resolvable:$true] %s1665
      %1668 = dma.vmem_to_hbm [thread:$0]  %s1666, 32, %s59, [#allocation3]
    $region125: #{gnn_forward.1} parent=1 // pred_fallthru
      _
    // Predicated region
    $region126: #{gnn_forward.1} parent=1 // pred_check
      _
    $region127: #{gnn_forward.1} parent=1 // pred_check_branch
      %1670 = sbr.rel (0) target = $region129
    $region128: #{gnn_forward.1} parent=1 // pred_region
      %1671 = dma.done [#allocation3], 32
    $region129: #{gnn_forward.1} parent=1 // pred_fallthru
      _
    %1672 = vsyncpa [#allocation3], 1
    %1673 = vsyncpa [#allocation4], 1

</llo_original>
